<compile_context>
chip_gen: v7x
topology: tpu7x:2x2x1
jax: 0.10.0
libtpu: 0.0.40
codegen_flags: <defaults>
</compile_context>

<pallas_src>
import functools

import jax
import jax.numpy as jnp
from jax.experimental import pallas as pl
from jax.experimental.pallas import tpu as pltpu


def fused_transformer_kernel(x_ref,
                             ln1_g_ref, ln1_b_ref, w_qkv_ref,
                             w_out_ref, b_out_ref,
                             ln2_g_ref, ln2_b_ref,
                             w_ff1_ref, b_ff1_ref, w_ff2_ref, b_ff2_ref,
                             o_ref,
                             x_vmem, head_vmem,
                             *, heads, dim_head):
    eps = 1e-5  # torch.nn.LayerNorm default
    inner = heads * dim_head
    layer = pl.program_id(1)
    n_layers = pl.num_programs(1)

    # Residual stream lives in fp32 VMEM scratch across the depth axis.
    @pl.when(layer == 0)
    def _():
        x_vmem[...] = x_ref[0].astype(jnp.float32)

    x = x_vmem[...]  # (N, D) fp32

    # ---------------- PreNorm 1 (biased variance, like torch) ----------------
    mu = jnp.mean(x, axis=-1, keepdims=True)
    var = jnp.mean((x - mu) ** 2, axis=-1, keepdims=True)
    xn = (x - mu) * jax.lax.rsqrt(var + eps) * ln1_g_ref[0] + ln1_b_ref[0]

    # ---------------- Attention ----------------
    # Fused QKV projection: bf16 operands, fp32 accumulation on the MXU.
    # (attention scale was folded into the Q columns of w_qkv in the wrapper)
    qkv = jnp.dot(xn.astype(jnp.bfloat16), w_qkv_ref[0],
                  preferred_element_type=jnp.float32)  # (N, 3*inner) fp32

    for h in range(heads):  # static unroll over heads
        lo = h * dim_head
        hi = (h + 1) * dim_head
        qh = qkv[:, lo:hi].astype(jnp.bfloat16)                       # (N, dh)
        kh = qkv[:, inner + lo:inner + hi].astype(jnp.bfloat16)       # (N, dh)
        vh = qkv[:, 2 * inner + lo:2 * inner + hi].astype(jnp.bfloat16)

        # q @ k^T without materializing a transpose (contract last dims).
        dots = jax.lax.dot_general(qh, kh, (((1,), (1,)), ((), ())),
                                   preferred_element_type=jnp.float32)  # (N, N)
        m = jnp.max(dots, axis=-1, keepdims=True)
        e = jnp.exp(dots - m)
        attn = e * pl.reciprocal(jnp.sum(e, axis=-1, keepdims=True), approx=True)

        head_vmem[:, lo:hi] = jnp.dot(attn.astype(jnp.bfloat16), vh,
                                      preferred_element_type=jnp.float32)

    attn_out = jnp.dot(head_vmem[...].astype(jnp.bfloat16), w_out_ref[0],
                       preferred_element_type=jnp.float32) + b_out_ref[0]
    x = x + attn_out  # residual 1

    # ---------------- PreNorm 2 + FeedForward ----------------
    mu2 = jnp.mean(x, axis=-1, keepdims=True)
    var2 = jnp.mean((x - mu2) ** 2, axis=-1, keepdims=True)
    xn2 = (x - mu2) * jax.lax.rsqrt(var2 + eps) * ln2_g_ref[0] + ln2_b_ref[0]

    h1 = jnp.dot(xn2.astype(jnp.bfloat16), w_ff1_ref[0],
                 preferred_element_type=jnp.float32) + b_ff1_ref[0]
    # exact (erf) GELU, kept in fp32 (matches torch nn.GELU; v5e EUP has no bf16)
    h1 = 0.5 * h1 * (1.0 + jax.lax.erf(h1 * 0.7071067811865476))
    ff = jnp.dot(h1.astype(jnp.bfloat16), w_ff2_ref[0],
                 preferred_element_type=jnp.float32) + b_ff2_ref[0]

    x = x + ff  # residual 2
    x_vmem[...] = x

    @pl.when(layer == n_layers - 1)
    def _():
        o_ref[0] = x.astype(o_ref.dtype)


def transformer_forward(x, layer_params, *, heads, dim_head):
    """Full `depth`-layer Transformer forward in a single pallas_call."""
    B, N, D = x.shape
    inner = heads * dim_head
    depth = len(layer_params)
    scale = float(dim_head) ** -0.5

    def stack(name):
        return jnp.stack([p[name] for p in layer_params], axis=0)

    # Weight prep (done once in the wrapper):
    #  * matmul weights -> bf16 (halves HBM/DMA/VMEM footprint, native MXU rate)
    #  * attention scale folded into the Q columns of the fused QKV weight
    #  * LayerNorm params / biases stay fp32 (added to fp32 accumulations)
    w_qkv = stack("w_qkv")
    w_qkv = w_qkv.at[:, :, :inner].multiply(scale).astype(jnp.bfloat16)

    weights = (
        stack("ln1_g"), stack("ln1_b"),
        w_qkv,
        stack("w_out").astype(jnp.bfloat16), stack("b_out"),
        stack("ln2_g"), stack("ln2_b"),
        stack("w_ff1").astype(jnp.bfloat16), stack("b_ff1"),
        stack("w_ff2").astype(jnp.bfloat16), stack("b_ff2"),
    )

    x_spec = pl.BlockSpec((1, N, D), lambda b, l: (b, 0, 0))
    w_specs = [pl.BlockSpec((1,) + w.shape[1:], lambda b, l: (l, 0, 0))
               for w in weights]

    kernel = functools.partial(fused_transformer_kernel,
                               heads=heads, dim_head=dim_head)

    return pl.pallas_call(
        kernel,
        out_shape=jax.ShapeDtypeStruct((B, N, D), x.dtype),
        grid_spec=pltpu.PrefetchScalarGridSpec(
            num_scalar_prefetch=0,
            grid=(B, depth),
            in_specs=[x_spec] + w_specs,
            out_specs=x_spec,
            scratch_shapes=[
                pltpu.VMEM((N, D), jnp.float32),      # residual stream carry
                pltpu.VMEM((N, inner), jnp.float32),  # per-head attention outs
            ],
        ),
        compiler_params=pltpu.CompilerParams(
            dimension_semantics=("parallel", "arbitrary")),
    )(x, *weights)


# ----------------------- pure-JAX fp32 reference (for checking) -----------------------
def _layernorm_ref(x, g, b, eps=1e-5):
    mu = jnp.mean(x, axis=-1, keepdims=True)
    var = jnp.mean((x - mu) ** 2, axis=-1, keepdims=True)
    return (x - mu) * jax.lax.rsqrt(var + eps) * g + b


def transformer_ref(x, layer_params, *, heads, dim_head):
    B, N, D = x.shape
    inner = heads * dim_head
    scale = float(dim_head) ** -0.5
    for p in layer_params:
        xn = _layernorm_ref(x, p["ln1_g"][0], p["ln1_b"][0])
        qkv = xn @ p["w_qkv"]
        q, k, v = jnp.split(qkv, 3, axis=-1)

        def to_heads(t):
            return jnp.transpose(t.reshape(B, N, heads, dim_head), (0, 2, 1, 3))

        q, k, v = to_heads(q), to_heads(k), to_heads(v)
        dots = jnp.einsum("bhnd,bhmd->bhnm", q, k) * scale
        attn = jax.nn.softmax(dots, axis=-1)
        out = jnp.einsum("bhnm,bhmd->bhnd", attn, v)
        out = jnp.transpose(out, (0, 2, 1, 3)).reshape(B, N, inner)
        x = out @ p["w_out"] + p["b_out"][0] + x
        xn2 = _layernorm_ref(x, p["ln2_g"][0], p["ln2_b"][0])
        h1 = xn2 @ p["w_ff1"] + p["b_ff1"][0]
        h1 = 0.5 * h1 * (1.0 + jax.lax.erf(h1 * 0.7071067811865476))
        x = h1 @ p["w_ff2"] + p["b_ff2"][0] + x
    return x


# ----------------------- deterministic parameter init -----------------------
def init_layer_params(key, dim, heads, dim_head, mlp_dim):
    inner = heads * dim_head
    keys = jax.random.split(key, 8)
    s = 0.02
    return {
        "ln1_g": jnp.ones((1, dim), jnp.float32),
        "ln1_b": jnp.zeros((1, dim), jnp.float32),
        "w_qkv": s * jax.random.normal(keys[0], (dim, 3 * inner), jnp.float32),
        "w_out": s * jax.random.normal(keys[1], (inner, dim), jnp.float32),
        "b_out": s * jax.random.normal(keys[2], (1, dim), jnp.float32),
        "ln2_g": jnp.ones((1, dim), jnp.float32),
        "ln2_b": jnp.zeros((1, dim), jnp.float32),
        "w_ff1": s * jax.random.normal(keys[3], (dim, mlp_dim), jnp.float32),
        "b_ff1": s * jax.random.normal(keys[4], (1, mlp_dim), jnp.float32),
        "w_ff2": s * jax.random.normal(keys[5], (mlp_dim, dim), jnp.float32),
        "b_ff2": s * jax.random.normal(keys[6], (1, dim), jnp.float32),
    }


if __name__ == "__main__":
    # Small shapes consistent with the Transformer forward:
    # batch=2, seq=8 tokens, dim=32, depth=2, heads=4, dim_head=8, mlp_dim=64
    # NOTE: these toy sizes are far below the (8,128) vreg tile, so the run is
    # overhead-bound; the kernel structure targets realistic ViT sizes.
    B, N, D = 2, 8, 32
    depth, heads, dim_head, mlp_dim = 2, 4, 8, 64

    key = jax.random.PRNGKey(0)
    key, xk = jax.random.split(key)
    x = jax.random.normal(xk, (B, N, D), jnp.float32)

    layer_keys = jax.random.split(key, depth)
    layer_params = [init_layer_params(k, D, heads, dim_head, mlp_dim)
                    for k in layer_keys]

    out = transformer_forward(x, layer_params, heads=heads, dim_head=dim_head)
    out = jax.block_until_ready(out)

    ref = transformer_ref(x, layer_params, heads=heads, dim_head=dim_head)
    assert out.shape == (B, N, D)
    # bf16 matmul operands (fp32 accumulation) vs fp32 reference -> loosen tol.
    assert jnp.allclose(out, ref, rtol=2e-2, atol=2e-2), \
        f"mismatch: max abs err = {jnp.max(jnp.abs(out - ref))}"

    print("KERNEL_OK")
</pallas_src>

<mosaic_0001>
module attributes {stable_mosaic.version = 11 : i64} {
  func.func @fused_transformer_kernel(%arg0: i32, %arg1: i32, %arg2: memref<1x8x32xf32, #tpu.memory_space<vmem>>, %arg3: memref<1x1x32xf32, #tpu.memory_space<vmem>>, %arg4: memref<1x1x32xf32, #tpu.memory_space<vmem>>, %arg5: memref<1x32x96xbf16, #tpu.memory_space<vmem>>, %arg6: memref<1x32x32xbf16, #tpu.memory_space<vmem>>, %arg7: memref<1x1x32xf32, #tpu.memory_space<vmem>>, %arg8: memref<1x1x32xf32, #tpu.memory_space<vmem>>, %arg9: memref<1x1x32xf32, #tpu.memory_space<vmem>>, %arg10: memref<1x32x64xbf16, #tpu.memory_space<vmem>>, %arg11: memref<1x1x64xf32, #tpu.memory_space<vmem>>, %arg12: memref<1x64x32xbf16, #tpu.memory_space<vmem>>, %arg13: memref<1x1x32xf32, #tpu.memory_space<vmem>>, %arg14: memref<1x8x32xf32, #tpu.memory_space<vmem>>, %arg15: memref<8x32xf32, #tpu.memory_space<vmem>>, %arg16: memref<8x32xf32, #tpu.memory_space<vmem>>) attributes {dimension_semantics = [#tpu.dimension_semantics<parallel>, #tpu.dimension_semantics<arbitrary>], iteration_bounds = array<i64: 2, 2>, scalar_prefetch = 0 : i64, scratch_operands = 2 : i64, tpu.core_type = #tpu.core_type<tc>, window_params = [{transform_indices = @transform_0, window_bounds = array<i64: 1, 8, 32>}, {transform_indices = @transform_1, window_bounds = array<i64: 1, 1, 32>}, {transform_indices = @transform_2, window_bounds = array<i64: 1, 1, 32>}, {transform_indices = @transform_3, window_bounds = array<i64: 1, 32, 96>}, {transform_indices = @transform_4, window_bounds = array<i64: 1, 32, 32>}, {transform_indices = @transform_5, window_bounds = array<i64: 1, 1, 32>}, {transform_indices = @transform_6, window_bounds = array<i64: 1, 1, 32>}, {transform_indices = @transform_7, window_bounds = array<i64: 1, 1, 32>}, {transform_indices = @transform_8, window_bounds = array<i64: 1, 32, 64>}, {transform_indices = @transform_9, window_bounds = array<i64: 1, 1, 64>}, {transform_indices = @transform_10, window_bounds = array<i64: 1, 64, 32>}, {transform_indices = @transform_11, window_bounds = array<i64: 1, 1, 32>}, {transform_indices = @transform_12, window_bounds = array<i64: 1, 8, 32>}]} {
    %c0_i32 = arith.constant 0 : i32
    %0 = arith.cmpi eq, %arg1, %c0_i32 : i32
    %1 = arith.extui %0 : i1 to i32
    %c0_i32_0 = arith.constant 0 : i32
    %2 = arith.cmpi ne, %1, %c0_i32_0 : i32
    scf.if %2 {
      %c0_77 = arith.constant 0 : index
      %c0_78 = arith.constant 0 : index
      %c0_79 = arith.constant 0 : index
      %179 = vector.load %arg2[%c0_77, %c0_78, %c0_79] : memref<1x8x32xf32, #tpu.memory_space<vmem>>, vector<1x8x32xf32>
      %180 = vector.shape_cast %179 : vector<1x8x32xf32> to vector<8x32xf32>
      %c0_80 = arith.constant 0 : index
      %c0_81 = arith.constant 0 : index
      %181 = vector.load %arg15[%c0_80, %c0_81] : memref<8x32xf32, #tpu.memory_space<vmem>>, vector<8x32xf32>
      tpu.vector_store %arg15[%c0_80, %c0_81], %180 {strides = array<i32>} : memref<8x32xf32, #tpu.memory_space<vmem>>, vector<8x32xf32>,
    } else {
    }
    %c0 = arith.constant 0 : index
    %c0_1 = arith.constant 0 : index
    %3 = vector.load %arg15[%c0, %c0_1] : memref<8x32xf32, #tpu.memory_space<vmem>>, vector<8x32xf32>
    %cst = arith.constant dense<0.000000e+00> : vector<8xf32>
    %4 = vector.multi_reduction <add>, %3, %cst [1] : vector<8x32xf32> to vector<8xf32>
    %5 = vector.shape_cast %4 : vector<8xf32> to vector<8x1xf32>
    %cst_2 = arith.constant 3.200000e+01 : f32
    %6 = vector.broadcast %cst_2 : f32 to vector<8x1xf32>
    %7 = arith.divf %5, %6 : vector<8x1xf32>
    %8 = vector.broadcast %7 : vector<8x1xf32> to vector<8x32xf32>
    %9 = arith.subf %3, %8 : vector<8x32xf32>
    %10 = arith.mulf %9, %9 : vector<8x32xf32>
    %cst_3 = arith.constant dense<0.000000e+00> : vector<8xf32>
    %11 = vector.multi_reduction <add>, %10, %cst_3 [1] : vector<8x32xf32> to vector<8xf32>
    %12 = vector.shape_cast %11 : vector<8xf32> to vector<8x1xf32>
    %cst_4 = arith.constant 3.200000e+01 : f32
    %13 = vector.broadcast %cst_4 : f32 to vector<8x1xf32>
    %14 = arith.divf %12, %13 : vector<8x1xf32>
    %15 = vector.broadcast %7 : vector<8x1xf32> to vector<8x32xf32>
    %16 = arith.subf %3, %15 : vector<8x32xf32>
    %cst_5 = arith.constant 9.99999974E-6 : f32
    %17 = vector.broadcast %cst_5 : f32 to vector<8x1xf32>
    %18 = arith.addf %14, %17 : vector<8x1xf32>
    %19 = math.rsqrt %18 : vector<8x1xf32>
    %20 = vector.broadcast %19 : vector<8x1xf32> to vector<8x32xf32>
    %21 = arith.mulf %16, %20 : vector<8x32xf32>
    %c0_6 = arith.constant 0 : index
    %c0_7 = arith.constant 0 : index
    %c0_8 = arith.constant 0 : index
    %22 = vector.load %arg3[%c0_6, %c0_7, %c0_8] : memref<1x1x32xf32, #tpu.memory_space<vmem>>, vector<1x1x32xf32>
    %23 = vector.shape_cast %22 : vector<1x1x32xf32> to vector<1x32xf32>
    %24 = vector.broadcast %23 : vector<1x32xf32> to vector<8x32xf32>
    %25 = arith.mulf %21, %24 : vector<8x32xf32>
    %c0_9 = arith.constant 0 : index
    %c0_10 = arith.constant 0 : index
    %c0_11 = arith.constant 0 : index
    %26 = vector.load %arg4[%c0_9, %c0_10, %c0_11] : memref<1x1x32xf32, #tpu.memory_space<vmem>>, vector<1x1x32xf32>
    %27 = vector.shape_cast %26 : vector<1x1x32xf32> to vector<1x32xf32>
    %28 = vector.broadcast %27 : vector<1x32xf32> to vector<8x32xf32>
    %29 = arith.addf %25, %28 : vector<8x32xf32>
    %30 = arith.truncf %29 : vector<8x32xf32> to vector<8x32xbf16>
    %c0_12 = arith.constant 0 : index
    %c0_13 = arith.constant 0 : index
    %c0_14 = arith.constant 0 : index
    %31 = vector.load %arg5[%c0_12, %c0_13, %c0_14] : memref<1x32x96xbf16, #tpu.memory_space<vmem>>, vector<1x32x96xbf16>
    %32 = vector.shape_cast %31 : vector<1x32x96xbf16> to vector<32x96xbf16>
    %cst_15 = arith.constant dense<0.000000e+00> : vector<8x96xf32>
    %33 = tpu.matmul %30, %32, %cst_15 {dimension_numbers = #tpu.dot_dimension_numbers<[1], [0], [0], [1], [0, 0, 1, 1], [], []>} : vector<8x32xbf16>, vector<32x96xbf16>, vector<8x96xf32> -> vector<8x96xf32>
    %34 = vector.extract_strided_slice %33 {offsets = [0, 0], sizes = [8, 8], strides = [1, 1]} : vector<8x96xf32> to vector<8x8xf32>
    %35 = arith.truncf %34 : vector<8x8xf32> to vector<8x8xbf16>
    %36 = vector.extract_strided_slice %33 {offsets = [0, 32], sizes = [8, 8], strides = [1, 1]} : vector<8x96xf32> to vector<8x8xf32>
    %37 = arith.truncf %36 : vector<8x8xf32> to vector<8x8xbf16>
    %38 = vector.extract_strided_slice %33 {offsets = [0, 64], sizes = [8, 8], strides = [1, 1]} : vector<8x96xf32> to vector<8x8xf32>
    %39 = arith.truncf %38 : vector<8x8xf32> to vector<8x8xbf16>
    %cst_16 = arith.constant dense<0.000000e+00> : vector<8x8xf32>
    %40 = tpu.matmul %35, %37, %cst_16 {dimension_numbers = #tpu.dot_dimension_numbers<[1], [1], [0], [0], [0, 0, 1, 0], [], []>} : vector<8x8xbf16>, vector<8x8xbf16>, vector<8x8xf32> -> vector<8x8xf32>
    %cst_17 = arith.constant dense<0xFF800000> : vector<8xf32>
    %41 = vector.multi_reduction <maximumf>, %40, %cst_17 [1] : vector<8x8xf32> to vector<8xf32>
    %42 = vector.shape_cast %41 : vector<8xf32> to vector<8x1xf32>
    %43 = vector.broadcast %42 : vector<8x1xf32> to vector<8x8xf32>
    %44 = arith.subf %40, %43 : vector<8x8xf32>
    %45 = math.exp %44 : vector<8x8xf32>
    %cst_18 = arith.constant dense<0.000000e+00> : vector<8xf32>
    %46 = vector.multi_reduction <add>, %45, %cst_18 [1] : vector<8x8xf32> to vector<8xf32>
    %47 = vector.shape_cast %46 : vector<8xf32> to vector<8x1xf32>
    %48 = tpu.reciprocal %47 {approx = true} : vector<8x1xf32> -> vector<8x1xf32>
    %49 = vector.broadcast %48 : vector<8x1xf32> to vector<8x8xf32>
    %50 = arith.mulf %45, %49 : vector<8x8xf32>
    %51 = arith.truncf %50 : vector<8x8xf32> to vector<8x8xbf16>
    %cst_19 = arith.constant dense<0.000000e+00> : vector<8x8xf32>
    %52 = tpu.matmul %51, %39, %cst_19 {dimension_numbers = #tpu.dot_dimension_numbers<[1], [0], [0], [1], [0, 0, 1, 1], [], []>} : vector<8x8xbf16>, vector<8x8xbf16>, vector<8x8xf32> -> vector<8x8xf32>
    %c0_20 = arith.constant 0 : index
    %c0_21 = arith.constant 0 : index
    %53 = vector.load %arg16[%c0_20, %c0_21] : memref<8x32xf32, #tpu.memory_space<vmem>>, vector<8x8xf32>
    tpu.vector_store %arg16[%c0_20, %c0_21], %52 {strides = array<i32>} : memref<8x32xf32, #tpu.memory_space<vmem>>, vector<8x8xf32>,
    %54 = vector.extract_strided_slice %33 {offsets = [0, 8], sizes = [8, 8], strides = [1, 1]} : vector<8x96xf32> to vector<8x8xf32>
    %55 = arith.truncf %54 : vector<8x8xf32> to vector<8x8xbf16>
    %56 = vector.extract_strided_slice %33 {offsets = [0, 40], sizes = [8, 8], strides = [1, 1]} : vector<8x96xf32> to vector<8x8xf32>
    %57 = arith.truncf %56 : vector<8x8xf32> to vector<8x8xbf16>
    %58 = vector.extract_strided_slice %33 {offsets = [0, 72], sizes = [8, 8], strides = [1, 1]} : vector<8x96xf32> to vector<8x8xf32>
    %59 = arith.truncf %58 : vector<8x8xf32> to vector<8x8xbf16>
    %cst_22 = arith.constant dense<0.000000e+00> : vector<8x8xf32>
    %60 = tpu.matmul %55, %57, %cst_22 {dimension_numbers = #tpu.dot_dimension_numbers<[1], [1], [0], [0], [0, 0, 1, 0], [], []>} : vector<8x8xbf16>, vector<8x8xbf16>, vector<8x8xf32> -> vector<8x8xf32>
    %cst_23 = arith.constant dense<0xFF800000> : vector<8xf32>
    %61 = vector.multi_reduction <maximumf>, %60, %cst_23 [1] : vector<8x8xf32> to vector<8xf32>
    %62 = vector.shape_cast %61 : vector<8xf32> to vector<8x1xf32>
    %63 = vector.broadcast %62 : vector<8x1xf32> to vector<8x8xf32>
    %64 = arith.subf %60, %63 : vector<8x8xf32>
    %65 = math.exp %64 : vector<8x8xf32>
    %cst_24 = arith.constant dense<0.000000e+00> : vector<8xf32>
    %66 = vector.multi_reduction <add>, %65, %cst_24 [1] : vector<8x8xf32> to vector<8xf32>
    %67 = vector.shape_cast %66 : vector<8xf32> to vector<8x1xf32>
    %68 = tpu.reciprocal %67 {approx = true} : vector<8x1xf32> -> vector<8x1xf32>
    %69 = vector.broadcast %68 : vector<8x1xf32> to vector<8x8xf32>
    %70 = arith.mulf %65, %69 : vector<8x8xf32>
    %71 = arith.truncf %70 : vector<8x8xf32> to vector<8x8xbf16>
    %cst_25 = arith.constant dense<0.000000e+00> : vector<8x8xf32>
    %72 = tpu.matmul %71, %59, %cst_25 {dimension_numbers = #tpu.dot_dimension_numbers<[1], [0], [0], [1], [0, 0, 1, 1], [], []>} : vector<8x8xbf16>, vector<8x8xbf16>, vector<8x8xf32> -> vector<8x8xf32>
    %c0_26 = arith.constant 0 : index
    %c8 = arith.constant 8 : index
    %73 = vector.load %arg16[%c0_26, %c8] : memref<8x32xf32, #tpu.memory_space<vmem>>, vector<8x8xf32>
    tpu.vector_store %arg16[%c0_26, %c8], %72 {strides = array<i32>} : memref<8x32xf32, #tpu.memory_space<vmem>>, vector<8x8xf32>,
    %74 = vector.extract_strided_slice %33 {offsets = [0, 16], sizes = [8, 8], strides = [1, 1]} : vector<8x96xf32> to vector<8x8xf32>
    %75 = arith.truncf %74 : vector<8x8xf32> to vector<8x8xbf16>
    %76 = vector.extract_strided_slice %33 {offsets = [0, 48], sizes = [8, 8], strides = [1, 1]} : vector<8x96xf32> to vector<8x8xf32>
    %77 = arith.truncf %76 : vector<8x8xf32> to vector<8x8xbf16>
    %78 = vector.extract_strided_slice %33 {offsets = [0, 80], sizes = [8, 8], strides = [1, 1]} : vector<8x96xf32> to vector<8x8xf32>
    %79 = arith.truncf %78 : vector<8x8xf32> to vector<8x8xbf16>
    %cst_27 = arith.constant dense<0.000000e+00> : vector<8x8xf32>
    %80 = tpu.matmul %75, %77, %cst_27 {dimension_numbers = #tpu.dot_dimension_numbers<[1], [1], [0], [0], [0, 0, 1, 0], [], []>} : vector<8x8xbf16>, vector<8x8xbf16>, vector<8x8xf32> -> vector<8x8xf32>
    %cst_28 = arith.constant dense<0xFF800000> : vector<8xf32>
    %81 = vector.multi_reduction <maximumf>, %80, %cst_28 [1] : vector<8x8xf32> to vector<8xf32>
    %82 = vector.shape_cast %81 : vector<8xf32> to vector<8x1xf32>
    %83 = vector.broadcast %82 : vector<8x1xf32> to vector<8x8xf32>
    %84 = arith.subf %80, %83 : vector<8x8xf32>
    %85 = math.exp %84 : vector<8x8xf32>
    %cst_29 = arith.constant dense<0.000000e+00> : vector<8xf32>
    %86 = vector.multi_reduction <add>, %85, %cst_29 [1] : vector<8x8xf32> to vector<8xf32>
    %87 = vector.shape_cast %86 : vector<8xf32> to vector<8x1xf32>
    %88 = tpu.reciprocal %87 {approx = true} : vector<8x1xf32> -> vector<8x1xf32>
    %89 = vector.broadcast %88 : vector<8x1xf32> to vector<8x8xf32>
    %90 = arith.mulf %85, %89 : vector<8x8xf32>
    %91 = arith.truncf %90 : vector<8x8xf32> to vector<8x8xbf16>
    %cst_30 = arith.constant dense<0.000000e+00> : vector<8x8xf32>
    %92 = tpu.matmul %91, %79, %cst_30 {dimension_numbers = #tpu.dot_dimension_numbers<[1], [0], [0], [1], [0, 0, 1, 1], [], []>} : vector<8x8xbf16>, vector<8x8xbf16>, vector<8x8xf32> -> vector<8x8xf32>
    %c0_31 = arith.constant 0 : index
    %c16 = arith.constant 16 : index
    %93 = vector.load %arg16[%c0_31, %c16] : memref<8x32xf32, #tpu.memory_space<vmem>>, vector<8x8xf32>
    tpu.vector_store %arg16[%c0_31, %c16], %92 {strides = array<i32>} : memref<8x32xf32, #tpu.memory_space<vmem>>, vector<8x8xf32>,
    %94 = vector.extract_strided_slice %33 {offsets = [0, 24], sizes = [8, 8], strides = [1, 1]} : vector<8x96xf32> to vector<8x8xf32>
    %95 = arith.truncf %94 : vector<8x8xf32> to vector<8x8xbf16>
    %96 = vector.extract_strided_slice %33 {offsets = [0, 56], sizes = [8, 8], strides = [1, 1]} : vector<8x96xf32> to vector<8x8xf32>
    %97 = arith.truncf %96 : vector<8x8xf32> to vector<8x8xbf16>
    %98 = vector.extract_strided_slice %33 {offsets = [0, 88], sizes = [8, 8], strides = [1, 1]} : vector<8x96xf32> to vector<8x8xf32>
    %99 = arith.truncf %98 : vector<8x8xf32> to vector<8x8xbf16>
    %cst_32 = arith.constant dense<0.000000e+00> : vector<8x8xf32>
    %100 = tpu.matmul %95, %97, %cst_32 {dimension_numbers = #tpu.dot_dimension_numbers<[1], [1], [0], [0], [0, 0, 1, 0], [], []>} : vector<8x8xbf16>, vector<8x8xbf16>, vector<8x8xf32> -> vector<8x8xf32>
    %cst_33 = arith.constant dense<0xFF800000> : vector<8xf32>
    %101 = vector.multi_reduction <maximumf>, %100, %cst_33 [1] : vector<8x8xf32> to vector<8xf32>
    %102 = vector.shape_cast %101 : vector<8xf32> to vector<8x1xf32>
    %103 = vector.broadcast %102 : vector<8x1xf32> to vector<8x8xf32>
    %104 = arith.subf %100, %103 : vector<8x8xf32>
    %105 = math.exp %104 : vector<8x8xf32>
    %cst_34 = arith.constant dense<0.000000e+00> : vector<8xf32>
    %106 = vector.multi_reduction <add>, %105, %cst_34 [1] : vector<8x8xf32> to vector<8xf32>
    %107 = vector.shape_cast %106 : vector<8xf32> to vector<8x1xf32>
    %108 = tpu.reciprocal %107 {approx = true} : vector<8x1xf32> -> vector<8x1xf32>
    %109 = vector.broadcast %108 : vector<8x1xf32> to vector<8x8xf32>
    %110 = arith.mulf %105, %109 : vector<8x8xf32>
    %111 = arith.truncf %110 : vector<8x8xf32> to vector<8x8xbf16>
    %cst_35 = arith.constant dense<0.000000e+00> : vector<8x8xf32>
    %112 = tpu.matmul %111, %99, %cst_35 {dimension_numbers = #tpu.dot_dimension_numbers<[1], [0], [0], [1], [0, 0, 1, 1], [], []>} : vector<8x8xbf16>, vector<8x8xbf16>, vector<8x8xf32> -> vector<8x8xf32>
    %c0_36 = arith.constant 0 : index
    %c24 = arith.constant 24 : index
    %113 = vector.load %arg16[%c0_36, %c24] : memref<8x32xf32, #tpu.memory_space<vmem>>, vector<8x8xf32>
    tpu.vector_store %arg16[%c0_36, %c24], %112 {strides = array<i32>} : memref<8x32xf32, #tpu.memory_space<vmem>>, vector<8x8xf32>,
    %c0_37 = arith.constant 0 : index
    %c0_38 = arith.constant 0 : index
    %114 = vector.load %arg16[%c0_37, %c0_38] : memref<8x32xf32, #tpu.memory_space<vmem>>, vector<8x32xf32>
    %115 = arith.truncf %114 : vector<8x32xf32> to vector<8x32xbf16>
    %c0_39 = arith.constant 0 : index
    %c0_40 = arith.constant 0 : index
    %c0_41 = arith.constant 0 : index
    %116 = vector.load %arg6[%c0_39, %c0_40, %c0_41] : memref<1x32x32xbf16, #tpu.memory_space<vmem>>, vector<1x32x32xbf16>
    %117 = vector.shape_cast %116 : vector<1x32x32xbf16> to vector<32x32xbf16>
    %cst_42 = arith.constant dense<0.000000e+00> : vector<8x32xf32>
    %118 = tpu.matmul %115, %117, %cst_42 {dimension_numbers = #tpu.dot_dimension_numbers<[1], [0], [0], [1], [0, 0, 1, 1], [], []>} : vector<8x32xbf16>, vector<32x32xbf16>, vector<8x32xf32> -> vector<8x32xf32>
    %c0_43 = arith.constant 0 : index
    %c0_44 = arith.constant 0 : index
    %c0_45 = arith.constant 0 : index
    %119 = vector.load %arg7[%c0_43, %c0_44, %c0_45] : memref<1x1x32xf32, #tpu.memory_space<vmem>>, vector<1x1x32xf32>
    %120 = vector.shape_cast %119 : vector<1x1x32xf32> to vector<1x32xf32>
    %121 = vector.broadcast %120 : vector<1x32xf32> to vector<8x32xf32>
    %122 = arith.addf %118, %121 : vector<8x32xf32>
    %123 = arith.addf %3, %122 : vector<8x32xf32>
    %cst_46 = arith.constant dense<0.000000e+00> : vector<8xf32>
    %124 = vector.multi_reduction <add>, %123, %cst_46 [1] : vector<8x32xf32> to vector<8xf32>
    %125 = vector.shape_cast %124 : vector<8xf32> to vector<8x1xf32>
    %cst_47 = arith.constant 3.200000e+01 : f32
    %126 = vector.broadcast %cst_47 : f32 to vector<8x1xf32>
    %127 = arith.divf %125, %126 : vector<8x1xf32>
    %128 = vector.broadcast %127 : vector<8x1xf32> to vector<8x32xf32>
    %129 = arith.subf %123, %128 : vector<8x32xf32>
    %130 = arith.mulf %129, %129 : vector<8x32xf32>
    %cst_48 = arith.constant dense<0.000000e+00> : vector<8xf32>
    %131 = vector.multi_reduction <add>, %130, %cst_48 [1] : vector<8x32xf32> to vector<8xf32>
    %132 = vector.shape_cast %131 : vector<8xf32> to vector<8x1xf32>
    %cst_49 = arith.constant 3.200000e+01 : f32
    %133 = vector.broadcast %cst_49 : f32 to vector<8x1xf32>
    %134 = arith.divf %132, %133 : vector<8x1xf32>
    %135 = vector.broadcast %127 : vector<8x1xf32> to vector<8x32xf32>
    %136 = arith.subf %123, %135 : vector<8x32xf32>
    %cst_50 = arith.constant 9.99999974E-6 : f32
    %137 = vector.broadcast %cst_50 : f32 to vector<8x1xf32>
    %138 = arith.addf %134, %137 : vector<8x1xf32>
    %139 = math.rsqrt %138 : vector<8x1xf32>
    %140 = vector.broadcast %139 : vector<8x1xf32> to vector<8x32xf32>
    %141 = arith.mulf %136, %140 : vector<8x32xf32>
    %c0_51 = arith.constant 0 : index
    %c0_52 = arith.constant 0 : index
    %c0_53 = arith.constant 0 : index
    %142 = vector.load %arg8[%c0_51, %c0_52, %c0_53] : memref<1x1x32xf32, #tpu.memory_space<vmem>>, vector<1x1x32xf32>
    %143 = vector.shape_cast %142 : vector<1x1x32xf32> to vector<1x32xf32>
    %144 = vector.broadcast %143 : vector<1x32xf32> to vector<8x32xf32>
    %145 = arith.mulf %141, %144 : vector<8x32xf32>
    %c0_54 = arith.constant 0 : index
    %c0_55 = arith.constant 0 : index
    %c0_56 = arith.constant 0 : index
    %146 = vector.load %arg9[%c0_54, %c0_55, %c0_56] : memref<1x1x32xf32, #tpu.memory_space<vmem>>, vector<1x1x32xf32>
    %147 = vector.shape_cast %146 : vector<1x1x32xf32> to vector<1x32xf32>
    %148 = vector.broadcast %147 : vector<1x32xf32> to vector<8x32xf32>
    %149 = arith.addf %145, %148 : vector<8x32xf32>
    %150 = arith.truncf %149 : vector<8x32xf32> to vector<8x32xbf16>
    %c0_57 = arith.constant 0 : index
    %c0_58 = arith.constant 0 : index
    %c0_59 = arith.constant 0 : index
    %151 = vector.load %arg10[%c0_57, %c0_58, %c0_59] : memref<1x32x64xbf16, #tpu.memory_space<vmem>>, vector<1x32x64xbf16>
    %152 = vector.shape_cast %151 : vector<1x32x64xbf16> to vector<32x64xbf16>
    %cst_60 = arith.constant dense<0.000000e+00> : vector<8x64xf32>
    %153 = tpu.matmul %150, %152, %cst_60 {dimension_numbers = #tpu.dot_dimension_numbers<[1], [0], [0], [1], [0, 0, 1, 1], [], []>} : vector<8x32xbf16>, vector<32x64xbf16>, vector<8x64xf32> -> vector<8x64xf32>
    %c0_61 = arith.constant 0 : index
    %c0_62 = arith.constant 0 : index
    %c0_63 = arith.constant 0 : index
    %154 = vector.load %arg11[%c0_61, %c0_62, %c0_63] : memref<1x1x64xf32, #tpu.memory_space<vmem>>, vector<1x1x64xf32>
    %155 = vector.shape_cast %154 : vector<1x1x64xf32> to vector<1x64xf32>
    %156 = vector.broadcast %155 : vector<1x64xf32> to vector<8x64xf32>
    %157 = arith.addf %153, %156 : vector<8x64xf32>
    %cst_64 = arith.constant 5.000000e-01 : f32
    %158 = vector.broadcast %cst_64 : f32 to vector<8x64xf32>
    %159 = arith.mulf %158, %157 : vector<8x64xf32>
    %cst_65 = arith.constant 0.707106769 : f32
    %160 = vector.broadcast %cst_65 : f32 to vector<8x64xf32>
    %161 = arith.mulf %157, %160 : vector<8x64xf32>
    %162 = math.erf %161 : vector<8x64xf32>
    %cst_66 = arith.constant 1.000000e+00 : f32
    %163 = vector.broadcast %cst_66 : f32 to vector<8x64xf32>
    %164 = arith.addf %163, %162 : vector<8x64xf32>
    %165 = arith.mulf %159, %164 : vector<8x64xf32>
    %166 = arith.truncf %165 : vector<8x64xf32> to vector<8x64xbf16>
    %c0_67 = arith.constant 0 : index
    %c0_68 = arith.constant 0 : index
    %c0_69 = arith.constant 0 : index
    %167 = vector.load %arg12[%c0_67, %c0_68, %c0_69] : memref<1x64x32xbf16, #tpu.memory_space<vmem>>, vector<1x64x32xbf16>
    %168 = vector.shape_cast %167 : vector<1x64x32xbf16> to vector<64x32xbf16>
    %cst_70 = arith.constant dense<0.000000e+00> : vector<8x32xf32>
    %169 = tpu.matmul %166, %168, %cst_70 {dimension_numbers = #tpu.dot_dimension_numbers<[1], [0], [0], [1], [0, 0, 1, 1], [], []>} : vector<8x64xbf16>, vector<64x32xbf16>, vector<8x32xf32> -> vector<8x32xf32>
    %c0_71 = arith.constant 0 : index
    %c0_72 = arith.constant 0 : index
    %c0_73 = arith.constant 0 : index
    %170 = vector.load %arg13[%c0_71, %c0_72, %c0_73] : memref<1x1x32xf32, #tpu.memory_space<vmem>>, vector<1x1x32xf32>
    %171 = vector.shape_cast %170 : vector<1x1x32xf32> to vector<1x32xf32>
    %172 = vector.broadcast %171 : vector<1x32xf32> to vector<8x32xf32>
    %173 = arith.addf %169, %172 : vector<8x32xf32>
    %174 = arith.addf %123, %173 : vector<8x32xf32>
    %c0_74 = arith.constant 0 : index
    %c0_75 = arith.constant 0 : index
    %175 = vector.load %arg15[%c0_74, %c0_75] : memref<8x32xf32, #tpu.memory_space<vmem>>, vector<8x32xf32>
    tpu.vector_store %arg15[%c0_74, %c0_75], %174 {strides = array<i32>} : memref<8x32xf32, #tpu.memory_space<vmem>>, vector<8x32xf32>,
    %c1_i32 = arith.constant 1 : i32
    %176 = arith.cmpi eq, %arg1, %c1_i32 : i32
    %177 = arith.extui %176 : i1 to i32
    %c0_i32_76 = arith.constant 0 : i32
    %178 = arith.cmpi ne, %177, %c0_i32_76 : i32
    scf.if %178 {
      %c0_77 = arith.constant 0 : index
      %c0_78 = arith.constant 0 : index
      %c0_79 = arith.constant 0 : index
      %179 = vector.load %arg14[%c0_77, %c0_78, %c0_79] : memref<1x8x32xf32, #tpu.memory_space<vmem>>, vector<1x8x32xf32>
      %180 = vector.shape_cast %179 : vector<1x8x32xf32> to vector<8x32xf32>
      %181 = vector.shape_cast %174 : vector<8x32xf32> to vector<1x8x32xf32>
      tpu.vector_store %arg14[%c0_77, %c0_78, %c0_79], %181 {strides = array<i32>} : memref<1x8x32xf32, #tpu.memory_space<vmem>>, vector<1x8x32xf32>,
    } else {
    }
    return
  }
  func.func @transform_0(%arg0: i32, %arg1: i32) -> (i32, i32, i32) {
    %c0_i32 = arith.constant 0 : i32
    %c0_i32_0 = arith.constant 0 : i32
    %c0_i32_1 = arith.constant 0 : i32
    return %arg0, %c0_i32, %c0_i32_0 : i32, i32, i32
  }
  func.func @transform_1(%arg0: i32, %arg1: i32) -> (i32, i32, i32) {
    %c0_i32 = arith.constant 0 : i32
    %c0_i32_0 = arith.constant 0 : i32
    %c0_i32_1 = arith.constant 0 : i32
    return %arg1, %c0_i32, %c0_i32_0 : i32, i32, i32
  }
  func.func @transform_2(%arg0: i32, %arg1: i32) -> (i32, i32, i32) {
    %c0_i32 = arith.constant 0 : i32
    %c0_i32_0 = arith.constant 0 : i32
    %c0_i32_1 = arith.constant 0 : i32
    return %arg1, %c0_i32, %c0_i32_0 : i32, i32, i32
  }
  func.func @transform_3(%arg0: i32, %arg1: i32) -> (i32, i32, i32) {
    %c0_i32 = arith.constant 0 : i32
    %c0_i32_0 = arith.constant 0 : i32
    %c0_i32_1 = arith.constant 0 : i32
    return %arg1, %c0_i32, %c0_i32_0 : i32, i32, i32
  }
  func.func @transform_4(%arg0: i32, %arg1: i32) -> (i32, i32, i32) {
    %c0_i32 = arith.constant 0 : i32
    %c0_i32_0 = arith.constant 0 : i32
    %c0_i32_1 = arith.constant 0 : i32
    return %arg1, %c0_i32, %c0_i32_0 : i32, i32, i32
  }
  func.func @transform_5(%arg0: i32, %arg1: i32) -> (i32, i32, i32) {
    %c0_i32 = arith.constant 0 : i32
    %c0_i32_0 = arith.constant 0 : i32
    %c0_i32_1 = arith.constant 0 : i32
    return %arg1, %c0_i32, %c0_i32_0 : i32, i32, i32
  }
  func.func @transform_6(%arg0: i32, %arg1: i32) -> (i32, i32, i32) {
    %c0_i32 = arith.constant 0 : i32
    %c0_i32_0 = arith.constant 0 : i32
    %c0_i32_1 = arith.constant 0 : i32
    return %arg1, %c0_i32, %c0_i32_0 : i32, i32, i32
  }
  func.func @transform_7(%arg0: i32, %arg1: i32) -> (i32, i32, i32) {
    %c0_i32 = arith.constant 0 : i32
    %c0_i32_0 = arith.constant 0 : i32
    %c0_i32_1 = arith.constant 0 : i32
    return %arg1, %c0_i32, %c0_i32_0 : i32, i32, i32
  }
  func.func @transform_8(%arg0: i32, %arg1: i32) -> (i32, i32, i32) {
    %c0_i32 = arith.constant 0 : i32
    %c0_i32_0 = arith.constant 0 : i32
    %c0_i32_1 = arith.constant 0 : i32
    return %arg1, %c0_i32, %c0_i32_0 : i32, i32, i32
  }
  func.func @transform_9(%arg0: i32, %arg1: i32) -> (i32, i32, i32) {
    %c0_i32 = arith.constant 0 : i32
    %c0_i32_0 = arith.constant 0 : i32
    %c0_i32_1 = arith.constant 0 : i32
    return %arg1, %c0_i32, %c0_i32_0 : i32, i32, i32
  }
  func.func @transform_10(%arg0: i32, %arg1: i32) -> (i32, i32, i32) {
    %c0_i32 = arith.constant 0 : i32
    %c0_i32_0 = arith.constant 0 : i32
    %c0_i32_1 = arith.constant 0 : i32
    return %arg1, %c0_i32, %c0_i32_0 : i32, i32, i32
  }
  func.func @transform_11(%arg0: i32, %arg1: i32) -> (i32, i32, i32) {
    %c0_i32 = arith.constant 0 : i32
    %c0_i32_0 = arith.constant 0 : i32
    %c0_i32_1 = arith.constant 0 : i32
    return %arg1, %c0_i32, %c0_i32_0 : i32, i32, i32
  }
  func.func @transform_12(%arg0: i32, %arg1: i32) -> (i32, i32, i32) {
    %c0_i32 = arith.constant 0 : i32
    %c0_i32_0 = arith.constant 0 : i32
    %c0_i32_1 = arith.constant 0 : i32
    return %arg0, %c0_i32, %c0_i32_0 : i32, i32, i32
  }
}

</mosaic_0001>

<llo_original>
// kernel: tpu_custom_call.1
$region0: #{tpu_custom_call.1}
  #allocation0 [shape = 'u32[]', space=smem, size = 0x4, offset = 0x4, fixed_abs, tag = 'smem constant byte address 0x4 - core index']
  #allocation1 [shape = 'u32[144,128]{1,0:T(1,128)}', space=vmem, size = 0x12000, scoped, tag = 'internal scratch']
  #allocation2 [shape = 'f32[8,32]{1,0:T(8,128)}', space=vmem, size = 0x1000, scoped, tag = 'scratch operand']
  #allocation3 [shape = 'f32[8,32]{1,0:T(8,128)}', space=vmem, size = 0x1000, scoped, tag = 'scratch operand']
  %s0 = inlined_call_operand.hbm [shape: f32[2,8,32], index: 0, kind: input, shape index: {}]
  %s1 = inlined_call_operand.vmem [shape: f32[2,1,32], index: 1, kind: input, shape index: {}]
  %s2 = inlined_call_operand.vmem [shape: f32[2,1,32], index: 2, kind: input, shape index: {}]
  %s3 = inlined_call_operand.vmem [shape: bf16[2,32,96], index: 3, kind: input, shape index: {}]
  %s4 = inlined_call_operand.vmem [shape: bf16[2,32,32], index: 4, kind: input, shape index: {}]
  %s5 = inlined_call_operand.hbm [shape: f32[2,1,32], index: 5, kind: input, shape index: {}]
  %s6 = inlined_call_operand.hbm [shape: f32[2,1,32], index: 6, kind: input, shape index: {}]
  %s7 = inlined_call_operand.hbm [shape: f32[2,1,32], index: 7, kind: input, shape index: {}]
  %s8 = inlined_call_operand.vmem [shape: bf16[2,32,64], index: 8, kind: input, shape index: {}]
  %s9 = inlined_call_operand.hbm [shape: f32[2,1,64], index: 9, kind: input, shape index: {}]
  %s10 = inlined_call_operand.vmem [shape: bf16[2,64,32], index: 10, kind: input, shape index: {}]
  %s11 = inlined_call_operand.vmem [shape: f32[2,1,32], index: 11, kind: input, shape index: {}]
  %s12 = inlined_call_operand.hbm [shape: f32[2,8,32], index: 12, kind: output, shape index: {}]
  %s13 = sld [smem:[#allocation0]]
  $region109: #{tpu_custom_call.1} parent=0
    _
  %s15 = ssub.s32 1, %s13
  %s16 = scalar_select 0, %s15, %s13
  $region1: #{tpu_custom_call.1} parent=0
    #allocation4 [shape = 'u8[8192]{0}', space=vmem, size = 0x2000, scoped, tag = 'input window, operand 0']
    #allocation5 [shape = 's32[2]{0}', space=sflag, size = 0x8, scoped, tag = 'scoped memory for tpu_custom_call.1']
    #allocation6 [shape = 's32[2]{0}', space=sflag, size = 0x8, scoped, tag = 'scoped memory for tpu_custom_call.1']
    #allocation7 [shape = 'u8[1024]{0}', space=vmem, size = 0x400, scoped, tag = 'input window, operand 5']
    #allocation8 [shape = 's32[2]{0}', space=sflag, size = 0x8, scoped, tag = 'scoped memory for tpu_custom_call.1']
    #allocation9 [shape = 'u8[1024]{0}', space=vmem, size = 0x400, scoped, tag = 'input window, operand 6']
    #allocation10 [shape = 'u8[1024]{0}', space=vmem, size = 0x400, scoped, tag = 'input window, operand 7']
    #allocation11 [shape = 's32[2]{0}', space=sflag, size = 0x8, scoped, tag = 'scoped memory for tpu_custom_call.1']
    #allocation12 [shape = 'u8[1024]{0}', space=vmem, size = 0x400, scoped, tag = 'input window, operand 9']
    #allocation13 [shape = 'u8[8192]{0}', space=vmem, size = 0x2000, scoped, tag = 'output window, operand 0']
    %17 = vsyncpa [#allocation5], 0
    %s18 = scalar_lea.sflag [#allocation5], 1
    %19 = vsyncpa %s18, 0
    %20 = vsyncpa [#allocation8], 0
    %s21 = scalar_lea.sflag [#allocation8], 1
    %22 = vsyncpa %s21, 0
    %23 = vsyncpa [#allocation11], 0
    %s24 = scalar_lea.sflag [#allocation11], 1
    %25 = vsyncpa %s24, 0
    %26 = vsyncpa [#allocation6], 0
    %s27 = scalar_lea.sflag [#allocation6], 1
    %28 = vsyncpa %s27, 0
    loop: start=0, step=1, limit=6
    $region2: #{tpu_custom_call.1} parent=1 // loop_pre_header
      _
    $region3: #{tpu_custom_call.1} parent=1 // loop_header
      %s30 = sphi 0, %s34
      %p31 = scmp.ge.s32.totalorder %s30, 6
      %s37 = sphi 0, %s49
      %s38 = sphi 0, %s45
      %s39 = sphi 0, %s37
      %s40 = sphi 0, %s38
      %s41 = sphi 0, %s39
      %s42 = sphi 0, %s40
      %s52 = sphi 0, %s54
      %s55 = sphi 0, %s52
      %s56 = sphi 0, %s55
      %s72 = sphi 0, %s56
      %s78 = sphi 0, %s80
      %s81 = sphi 0, %s78
      %s82 = sphi 0, %s81
      %s98 = sphi 0, %s82
      %s104 = sphi 0, %s106
      %s107 = sphi 0, %s104
      %s108 = sphi 0, %s107
      %s124 = sphi 0, %s108
      %s130 = sphi 0, %s132
      %s133 = sphi 0, %s130
      %s134 = sphi 0, %s133
      %s150 = sphi 0, %s134
      %s156 = sphi 0, %s158
      %s159 = sphi 0, %s156
      %s160 = sphi 0, %s159
      %s176 = sphi 0, %s160
      %s182 = sphi 0, %s184
      %s185 = sphi 0, %s182
      %s186 = sphi 0, %s185
      %s202 = sphi 0, %s186
      %s208 = sphi 0, %s210
      %s211 = sphi 0, %s208
      %s212 = sphi 0, %s211
      %s228 = sphi 0, %s212
      %s234 = sphi 0, %s236
      %s237 = sphi 0, %s234
      %s238 = sphi 0, %s237
      %s254 = sphi 0, %s238
      %s260 = sphi 0, %s262
      %s263 = sphi 0, %s260
      %s264 = sphi 0, %s263
      %s280 = sphi 0, %s264
      %s286 = sphi 0, %s288
      %s289 = sphi 0, %s286
      %s290 = sphi 0, %s289
      %s306 = sphi 0, %s290
      %s312 = sphi 0, %s314
      %s315 = sphi 0, %s312
      %s316 = sphi 0, %s315
      %s332 = sphi 0, %s316
      %s338 = sphi 0, %s340
      %s341 = sphi 0, %s338
      %s342 = sphi 0, %s341
      %s358 = sphi 0, %s342
      %s364 = sphi 0, %s366
      %s367 = sphi 0, %s364
      %s368 = sphi 0, %s367
      %s384 = sphi 0, %s368
    $region4: #{tpu_custom_call.1} parent=1 // loop_header_branch
      %33 = sbr.rel (%p31) target = $region8
    $region5: #{tpu_custom_call.1} parent=1 // loop_body
      %s35 = ssub.s32 %s30, 1
      %s36 = ssub.s32 %s30, 2
      %s43 = sadd.s32 1, %s38
      %p44 = scmp.ge.s32.totalorder %s43, 2
      %s45 = scalar_select %p44, 0, %s43
      %s46 = sadd.s32 1, %s37
      %s47 = scalar_select %p44, %s46, %s37
      %p48 = scmp.ge.s32.totalorder %s47, 2
      %s49 = scalar_select %p48, 0, %s47
      %s50 = ssub.s32 %s37, %s49
      %p51 = scmp.eq.s32.totalorder %s50, 0
      %s53 = sadd.s32 %s52, 1
      %s54 = scalar_select %p51, %s52, %s53
      %p57 = pneg %p51
      %p58 = scmp.eq.s32.totalorder %s30, 3
      %p59 = por %p57, %p58
      %p60 = scmp.ne.s32.totalorder %s52, %s55
      %p61 = scmp.eq.s32.totalorder %s30, 0
      %p62 = por %p60, %p61
      %p63 = scmp.ne.s32.totalorder %s52, %s55
      %p64 = scmp.eq.s32.totalorder %s35, 3
      %p65 = por %p63, %p64
      %p66 = scmp.ne.s32.totalorder %s55, %s56
      %p67 = scmp.eq.s32.totalorder %s35, 0
      %p68 = por %p66, %p67
      %p69 = scmp.ne.s32.totalorder %s55, %s56
      %p70 = scmp.eq.s32.totalorder %s36, 3
      %p71 = por %p69, %p70
      %p73 = scmp.ne.s32.totalorder %s56, %s72
      %p74 = scmp.eq.s32.totalorder %s36, 0
      %p75 = por %p73, %p74
      %s76 = ssub.s32 %s38, %s45
      %p77 = scmp.eq.s32.totalorder %s76, 0
      %s79 = sadd.s32 %s78, 1
      %s80 = scalar_select %p77, %s78, %s79
      %p83 = pneg %p77
      %p84 = scmp.eq.s32.totalorder %s30, 3
      %p85 = por %p83, %p84
      %p86 = scmp.ne.s32.totalorder %s78, %s81
      %p87 = scmp.eq.s32.totalorder %s30, 0
      %p88 = por %p86, %p87
      %p89 = scmp.ne.s32.totalorder %s78, %s81
      %p90 = scmp.eq.s32.totalorder %s35, 3
      %p91 = por %p89, %p90
      %p92 = scmp.ne.s32.totalorder %s81, %s82
      %p93 = scmp.eq.s32.totalorder %s35, 0
      %p94 = por %p92, %p93
      %p95 = scmp.ne.s32.totalorder %s81, %s82
      %p96 = scmp.eq.s32.totalorder %s36, 3
      %p97 = por %p95, %p96
      %p99 = scmp.ne.s32.totalorder %s82, %s98
      %p100 = scmp.eq.s32.totalorder %s36, 0
      %p101 = por %p99, %p100
      %s102 = ssub.s32 %s38, %s45
      %p103 = scmp.eq.s32.totalorder %s102, 0
      %s105 = sadd.s32 %s104, 1
      %s106 = scalar_select %p103, %s104, %s105
      %p109 = pneg %p103
      %p110 = scmp.eq.s32.totalorder %s30, 3
      %p111 = por %p109, %p110
      %p112 = scmp.ne.s32.totalorder %s104, %s107
      %p113 = scmp.eq.s32.totalorder %s30, 0
      %p114 = por %p112, %p113
      %p115 = scmp.ne.s32.totalorder %s104, %s107
      %p116 = scmp.eq.s32.totalorder %s35, 3
      %p117 = por %p115, %p116
      %p118 = scmp.ne.s32.totalorder %s107, %s108
      %p119 = scmp.eq.s32.totalorder %s35, 0
      %p120 = por %p118, %p119
      %p121 = scmp.ne.s32.totalorder %s107, %s108
      %p122 = scmp.eq.s32.totalorder %s36, 3
      %p123 = por %p121, %p122
      %p125 = scmp.ne.s32.totalorder %s108, %s124
      %p126 = scmp.eq.s32.totalorder %s36, 0
      %p127 = por %p125, %p126
      %s128 = ssub.s32 %s38, %s45
      %p129 = scmp.eq.s32.totalorder %s128, 0
      %s131 = sadd.s32 %s130, 1
      %s132 = scalar_select %p129, %s130, %s131
      %p135 = pneg %p129
      %p136 = scmp.eq.s32.totalorder %s30, 3
      %p137 = por %p135, %p136
      %p138 = scmp.ne.s32.totalorder %s130, %s133
      %p139 = scmp.eq.s32.totalorder %s30, 0
      %p140 = por %p138, %p139
      %p141 = scmp.ne.s32.totalorder %s130, %s133
      %p142 = scmp.eq.s32.totalorder %s35, 3
      %p143 = por %p141, %p142
      %p144 = scmp.ne.s32.totalorder %s133, %s134
      %p145 = scmp.eq.s32.totalorder %s35, 0
      %p146 = por %p144, %p145
      %p147 = scmp.ne.s32.totalorder %s133, %s134
      %p148 = scmp.eq.s32.totalorder %s36, 3
      %p149 = por %p147, %p148
      %p151 = scmp.ne.s32.totalorder %s134, %s150
      %p152 = scmp.eq.s32.totalorder %s36, 0
      %p153 = por %p151, %p152
      %s154 = ssub.s32 %s38, %s45
      %p155 = scmp.eq.s32.totalorder %s154, 0
      %s157 = sadd.s32 %s156, 1
      %s158 = scalar_select %p155, %s156, %s157
      %p161 = pneg %p155
      %p162 = scmp.eq.s32.totalorder %s30, 3
      %p163 = por %p161, %p162
      %p164 = scmp.ne.s32.totalorder %s156, %s159
      %p165 = scmp.eq.s32.totalorder %s30, 0
      %p166 = por %p164, %p165
      %p167 = scmp.ne.s32.totalorder %s156, %s159
      %p168 = scmp.eq.s32.totalorder %s35, 3
      %p169 = por %p167, %p168
      %p170 = scmp.ne.s32.totalorder %s159, %s160
      %p171 = scmp.eq.s32.totalorder %s35, 0
      %p172 = por %p170, %p171
      %p173 = scmp.ne.s32.totalorder %s159, %s160
      %p174 = scmp.eq.s32.totalorder %s36, 3
      %p175 = por %p173, %p174
      %p177 = scmp.ne.s32.totalorder %s160, %s176
      %p178 = scmp.eq.s32.totalorder %s36, 0
      %p179 = por %p177, %p178
      %s180 = ssub.s32 %s38, %s45
      %p181 = scmp.eq.s32.totalorder %s180, 0
      %s183 = sadd.s32 %s182, 1
      %s184 = scalar_select %p181, %s182, %s183
      %p187 = pneg %p181
      %p188 = scmp.eq.s32.totalorder %s30, 3
      %p189 = por %p187, %p188
      %p190 = scmp.ne.s32.totalorder %s182, %s185
      %p191 = scmp.eq.s32.totalorder %s30, 0
      %p192 = por %p190, %p191
      %p193 = scmp.ne.s32.totalorder %s182, %s185
      %p194 = scmp.eq.s32.totalorder %s35, 3
      %p195 = por %p193, %p194
      %p196 = scmp.ne.s32.totalorder %s185, %s186
      %p197 = scmp.eq.s32.totalorder %s35, 0
      %p198 = por %p196, %p197
      %p199 = scmp.ne.s32.totalorder %s185, %s186
      %p200 = scmp.eq.s32.totalorder %s36, 3
      %p201 = por %p199, %p200
      %p203 = scmp.ne.s32.totalorder %s186, %s202
      %p204 = scmp.eq.s32.totalorder %s36, 0
      %p205 = por %p203, %p204
      %s206 = ssub.s32 %s38, %s45
      %p207 = scmp.eq.s32.totalorder %s206, 0
      %s209 = sadd.s32 %s208, 1
      %s210 = scalar_select %p207, %s208, %s209
      %p213 = pneg %p207
      %p214 = scmp.eq.s32.totalorder %s30, 3
      %p215 = por %p213, %p214
      %p216 = scmp.ne.s32.totalorder %s208, %s211
      %p217 = scmp.eq.s32.totalorder %s30, 0
      %p218 = por %p216, %p217
      %p219 = scmp.ne.s32.totalorder %s208, %s211
      %p220 = scmp.eq.s32.totalorder %s35, 3
      %p221 = por %p219, %p220
      %p222 = scmp.ne.s32.totalorder %s211, %s212
      %p223 = scmp.eq.s32.totalorder %s35, 0
      %p224 = por %p222, %p223
      %p225 = scmp.ne.s32.totalorder %s211, %s212
      %p226 = scmp.eq.s32.totalorder %s36, 3
      %p227 = por %p225, %p226
      %p229 = scmp.ne.s32.totalorder %s212, %s228
      %p230 = scmp.eq.s32.totalorder %s36, 0
      %p231 = por %p229, %p230
      %s232 = ssub.s32 %s38, %s45
      %p233 = scmp.eq.s32.totalorder %s232, 0
      %s235 = sadd.s32 %s234, 1
      %s236 = scalar_select %p233, %s234, %s235
      %p239 = pneg %p233
      %p240 = scmp.eq.s32.totalorder %s30, 3
      %p241 = por %p239, %p240
      %p242 = scmp.ne.s32.totalorder %s234, %s237
      %p243 = scmp.eq.s32.totalorder %s30, 0
      %p244 = por %p242, %p243
      %p245 = scmp.ne.s32.totalorder %s234, %s237
      %p246 = scmp.eq.s32.totalorder %s35, 3
      %p247 = por %p245, %p246
      %p248 = scmp.ne.s32.totalorder %s237, %s238
      %p249 = scmp.eq.s32.totalorder %s35, 0
      %p250 = por %p248, %p249
      %p251 = scmp.ne.s32.totalorder %s237, %s238
      %p252 = scmp.eq.s32.totalorder %s36, 3
      %p253 = por %p251, %p252
      %p255 = scmp.ne.s32.totalorder %s238, %s254
      %p256 = scmp.eq.s32.totalorder %s36, 0
      %p257 = por %p255, %p256
      %s258 = ssub.s32 %s38, %s45
      %p259 = scmp.eq.s32.totalorder %s258, 0
      %s261 = sadd.s32 %s260, 1
      %s262 = scalar_select %p259, %s260, %s261
      %p265 = pneg %p259
      %p266 = scmp.eq.s32.totalorder %s30, 3
      %p267 = por %p265, %p266
      %p268 = scmp.ne.s32.totalorder %s260, %s263
      %p269 = scmp.eq.s32.totalorder %s30, 0
      %p270 = por %p268, %p269
      %p271 = scmp.ne.s32.totalorder %s260, %s263
      %p272 = scmp.eq.s32.totalorder %s35, 3
      %p273 = por %p271, %p272
      %p274 = scmp.ne.s32.totalorder %s263, %s264
      %p275 = scmp.eq.s32.totalorder %s35, 0
      %p276 = por %p274, %p275
      %p277 = scmp.ne.s32.totalorder %s263, %s264
      %p278 = scmp.eq.s32.totalorder %s36, 3
      %p279 = por %p277, %p278
      %p281 = scmp.ne.s32.totalorder %s264, %s280
      %p282 = scmp.eq.s32.totalorder %s36, 0
      %p283 = por %p281, %p282
      %s284 = ssub.s32 %s38, %s45
      %p285 = scmp.eq.s32.totalorder %s284, 0
      %s287 = sadd.s32 %s286, 1
      %s288 = scalar_select %p285, %s286, %s287
      %p291 = pneg %p285
      %p292 = scmp.eq.s32.totalorder %s30, 3
      %p293 = por %p291, %p292
      %p294 = scmp.ne.s32.totalorder %s286, %s289
      %p295 = scmp.eq.s32.totalorder %s30, 0
      %p296 = por %p294, %p295
      %p297 = scmp.ne.s32.totalorder %s286, %s289
      %p298 = scmp.eq.s32.totalorder %s35, 3
      %p299 = por %p297, %p298
      %p300 = scmp.ne.s32.totalorder %s289, %s290
      %p301 = scmp.eq.s32.totalorder %s35, 0
      %p302 = por %p300, %p301
      %p303 = scmp.ne.s32.totalorder %s289, %s290
      %p304 = scmp.eq.s32.totalorder %s36, 3
      %p305 = por %p303, %p304
      %p307 = scmp.ne.s32.totalorder %s290, %s306
      %p308 = scmp.eq.s32.totalorder %s36, 0
      %p309 = por %p307, %p308
      %s310 = ssub.s32 %s38, %s45
      %p311 = scmp.eq.s32.totalorder %s310, 0
      %s313 = sadd.s32 %s312, 1
      %s314 = scalar_select %p311, %s312, %s313
      %p317 = pneg %p311
      %p318 = scmp.eq.s32.totalorder %s30, 3
      %p319 = por %p317, %p318
      %p320 = scmp.ne.s32.totalorder %s312, %s315
      %p321 = scmp.eq.s32.totalorder %s30, 0
      %p322 = por %p320, %p321
      %p323 = scmp.ne.s32.totalorder %s312, %s315
      %p324 = scmp.eq.s32.totalorder %s35, 3
      %p325 = por %p323, %p324
      %p326 = scmp.ne.s32.totalorder %s315, %s316
      %p327 = scmp.eq.s32.totalorder %s35, 0
      %p328 = por %p326, %p327
      %p329 = scmp.ne.s32.totalorder %s315, %s316
      %p330 = scmp.eq.s32.totalorder %s36, 3
      %p331 = por %p329, %p330
      %p333 = scmp.ne.s32.totalorder %s316, %s332
      %p334 = scmp.eq.s32.totalorder %s36, 0
      %p335 = por %p333, %p334
      %s336 = ssub.s32 %s38, %s45
      %p337 = scmp.eq.s32.totalorder %s336, 0
      %s339 = sadd.s32 %s338, 1
      %s340 = scalar_select %p337, %s338, %s339
      %p343 = pneg %p337
      %p344 = scmp.eq.s32.totalorder %s30, 3
      %p345 = por %p343, %p344
      %p346 = scmp.ne.s32.totalorder %s338, %s341
      %p347 = scmp.eq.s32.totalorder %s30, 0
      %p348 = por %p346, %p347
      %p349 = scmp.ne.s32.totalorder %s338, %s341
      %p350 = scmp.eq.s32.totalorder %s35, 3
      %p351 = por %p349, %p350
      %p352 = scmp.ne.s32.totalorder %s341, %s342
      %p353 = scmp.eq.s32.totalorder %s35, 0
      %p354 = por %p352, %p353
      %p355 = scmp.ne.s32.totalorder %s341, %s342
      %p356 = scmp.eq.s32.totalorder %s36, 3
      %p357 = por %p355, %p356
      %p359 = scmp.ne.s32.totalorder %s342, %s358
      %p360 = scmp.eq.s32.totalorder %s36, 0
      %p361 = por %p359, %p360
      %s362 = ssub.s32 %s37, %s49
      %p363 = scmp.eq.s32.totalorder %s362, 0
      %s365 = sadd.s32 %s364, 1
      %s366 = scalar_select %p363, %s364, %s365
      %p369 = pneg %p363
      %p370 = scmp.eq.s32.totalorder %s30, 3
      %p371 = por %p369, %p370
      %p372 = scmp.ne.s32.totalorder %s364, %s367
      %p373 = scmp.eq.s32.totalorder %s30, 0
      %p374 = por %p372, %p373
      %p375 = scmp.ne.s32.totalorder %s364, %s367
      %p376 = scmp.eq.s32.totalorder %s35, 3
      %p377 = por %p375, %p376
      %p378 = scmp.ne.s32.totalorder %s367, %s368
      %p379 = scmp.eq.s32.totalorder %s35, 0
      %p380 = por %p378, %p379
      %p381 = scmp.ne.s32.totalorder %s367, %s368
      %p382 = scmp.eq.s32.totalorder %s36, 3
      %p383 = por %p381, %p382
      %p385 = scmp.ne.s32.totalorder %s368, %s384
      %p386 = scmp.eq.s32.totalorder %s36, 0
      %p387 = por %p385, %p386
      %p388 = scmp.le.s32.totalorder 1, %s30
      %p389 = scmp.lt.s32.totalorder %s30, 5
      %p390 = pnand %p388, %p389
      %p391 = pneg %p390
      // Predicated region
      $region9: #{tpu_custom_call.1} parent=5 // pred_check
        _
      $region10: #{tpu_custom_call.1} parent=5 // pred_check_branch
        %393 = sbr.rel (%p390) target = $region12
      $region11: #{tpu_custom_call.1} parent=5 // pred_region
        %s394 = ssub.s32 %s30, 1
      $region12: #{tpu_custom_call.1} parent=5 // pred_fallthru
        _
      %p395 = scmp.lt.s32.totalorder %s30, 4
      // Predicated region
      $region13: #{tpu_custom_call.1} parent=5 // pred_check
        %p396 = pneg %p395
      $region14: #{tpu_custom_call.1} parent=5 // pred_check_branch
        %398 = sbr.rel (%p396) target = $region16
      $region15: #{tpu_custom_call.1} parent=5 // pred_region
        // Predicated region
        $region17: #{tpu_custom_call.1} parent=15 // pred_check
          %p399 = pneg %p62
        $region18: #{tpu_custom_call.1} parent=15 // pred_check_branch
          %401 = sbr.rel (%p399) target = $region20
        $region19: #{tpu_custom_call.1} parent=15 // pred_region
          %s402 = sand.u32 %s52, 1
          %s403 = scalar_lea.sflag [#allocation5], %s402
          %s404 = sand.u32 %s52, 1
          %s405 = smul.addr %s404, 8
          %s406 = scalar_lea.vmem [#allocation4], %s405
          %s408 = ssub.s32 128, 128
          %409 = vsyncadd %s403, %s408
          %s410 = smul.addr %s37, 128
          %s411 = scalar_lea.hbm %s0, %s410
          %s413 = sshll.u32 %s406, 4
          %s414 = int_to_ptr.vmem [resolvable:$true] %s413
          %416 = dma.hbm_to_vmem [thread:$0]  %s411, 128, %s414, %s403
        $region20: #{tpu_custom_call.1} parent=15 // pred_fallthru
          _
        // Predicated region
        $region21: #{tpu_custom_call.1} parent=15 // pred_check
          %p417 = pneg %p88
        $region22: #{tpu_custom_call.1} parent=15 // pred_check_branch
          %419 = sbr.rel (%p417) target = $region24
        $region23: #{tpu_custom_call.1} parent=15 // pred_region
          %p420 = scmp.lt.s32.totalorder %s38, 1
          %s421 = scalar_select %p420, %s38, 1
          %s422 = scalar_lea.vmem %s1, %s421
        $region24: #{tpu_custom_call.1} parent=15 // pred_fallthru
          _
        // Predicated region
        $region25: #{tpu_custom_call.1} parent=15 // pred_check
          %p423 = pneg %p114
        $region26: #{tpu_custom_call.1} parent=15 // pred_check_branch
          %425 = sbr.rel (%p423) target = $region28
        $region27: #{tpu_custom_call.1} parent=15 // pred_region
          %p426 = scmp.lt.s32.totalorder %s38, 1
          %s427 = scalar_select %p426, %s38, 1
          %s428 = scalar_lea.vmem %s2, %s427
        $region28: #{tpu_custom_call.1} parent=15 // pred_fallthru
          _
        // Predicated region
        $region29: #{tpu_custom_call.1} parent=15 // pred_check
          %p429 = pneg %p140
        $region30: #{tpu_custom_call.1} parent=15 // pred_check_branch
          %431 = sbr.rel (%p429) target = $region32
        $region31: #{tpu_custom_call.1} parent=15 // pred_region
          %p432 = scmp.lt.s32.totalorder %s38, 1
          %s433 = scalar_select %p432, %s38, 1
          %s434 = smul.addr %s433, 4
          %s435 = smul.addr %s434, 4
          %s436 = scalar_lea.vmem %s3, %s435
        $region32: #{tpu_custom_call.1} parent=15 // pred_fallthru
          _
        // Predicated region
        $region33: #{tpu_custom_call.1} parent=15 // pred_check
          %p437 = pneg %p166
        $region34: #{tpu_custom_call.1} parent=15 // pred_check_branch
          %439 = sbr.rel (%p437) target = $region36
        $region35: #{tpu_custom_call.1} parent=15 // pred_region
          %p440 = scmp.lt.s32.totalorder %s38, 1
          %s441 = scalar_select %p440, %s38, 1
          %s442 = smul.addr %s441, 4
          %s443 = smul.addr %s442, 4
          %s444 = scalar_lea.vmem %s4, %s443
        $region36: #{tpu_custom_call.1} parent=15 // pred_fallthru
          _
        // Predicated region
        $region37: #{tpu_custom_call.1} parent=15 // pred_check
          %p445 = pneg %p192
        $region38: #{tpu_custom_call.1} parent=15 // pred_check_branch
          %447 = sbr.rel (%p445) target = $region40
        $region39: #{tpu_custom_call.1} parent=15 // pred_region
          %s448 = sand.u32 %s30, 1
          %s449 = scalar_lea.sflag [#allocation8], %s448
          %s450 = sand.u32 %s182, 1
          %s451 = scalar_lea.vmem [#allocation7], %s450
          %s453 = ssub.s32 16, 16
          %454 = vsyncadd %s449, %s453
          %s455 = smul.addr %s38, 16
          %s456 = scalar_lea.hbm %s5, %s455
          %s458 = sshll.u32 %s451, 4
          %s459 = int_to_ptr.vmem [resolvable:$true] %s458
          %461 = dma.hbm_to_vmem [thread:$0]  %s456, 16, %s459, %s449
        $region40: #{tpu_custom_call.1} parent=15 // pred_fallthru
          _
        // Predicated region
        $region41: #{tpu_custom_call.1} parent=15 // pred_check
          %p462 = pneg %p218
        $region42: #{tpu_custom_call.1} parent=15 // pred_check_branch
          %464 = sbr.rel (%p462) target = $region44
        $region43: #{tpu_custom_call.1} parent=15 // pred_region
          %s465 = sand.u32 %s30, 1
          %s466 = scalar_lea.sflag [#allocation8], %s465
          %s467 = sand.u32 %s208, 1
          %s468 = scalar_lea.vmem [#allocation9], %s467
          %s470 = ssub.s32 16, 16
          %471 = vsyncadd %s466, %s470
          %s472 = smul.addr %s38, 16
          %s473 = scalar_lea.hbm %s6, %s472
          %s475 = sshll.u32 %s468, 4
          %s476 = int_to_ptr.vmem [resolvable:$true] %s475
          %478 = dma.hbm_to_vmem [thread:$0]  %s473, 16, %s476, %s466
        $region44: #{tpu_custom_call.1} parent=15 // pred_fallthru
          _
        // Predicated region
        $region45: #{tpu_custom_call.1} parent=15 // pred_check
          %p479 = pneg %p244
        $region46: #{tpu_custom_call.1} parent=15 // pred_check_branch
          %481 = sbr.rel (%p479) target = $region48
        $region47: #{tpu_custom_call.1} parent=15 // pred_region
          %s482 = sand.u32 %s30, 1
          %s483 = scalar_lea.sflag [#allocation11], %s482
          %s484 = sand.u32 %s234, 1
          %s485 = scalar_lea.vmem [#allocation10], %s484
          %s487 = ssub.s32 16, 16
          %488 = vsyncadd %s483, %s487
          %s489 = smul.addr %s38, 16
          %s490 = scalar_lea.hbm %s7, %s489
          %s492 = sshll.u32 %s485, 4
          %s493 = int_to_ptr.vmem [resolvable:$true] %s492
          %495 = dma.hbm_to_vmem [thread:$0]  %s490, 16, %s493, %s483
        $region48: #{tpu_custom_call.1} parent=15 // pred_fallthru
          _
        // Predicated region
        $region49: #{tpu_custom_call.1} parent=15 // pred_check
          %p496 = pneg %p270
        $region50: #{tpu_custom_call.1} parent=15 // pred_check_branch
          %498 = sbr.rel (%p496) target = $region52
        $region51: #{tpu_custom_call.1} parent=15 // pred_region
          %p499 = scmp.lt.s32.totalorder %s38, 1
          %s500 = scalar_select %p499, %s38, 1
          %s501 = smul.addr %s500, 4
          %s502 = smul.addr %s501, 4
          %s503 = scalar_lea.vmem %s8, %s502
        $region52: #{tpu_custom_call.1} parent=15 // pred_fallthru
          _
        // Predicated region
        $region53: #{tpu_custom_call.1} parent=15 // pred_check
          %p504 = pneg %p296
        $region54: #{tpu_custom_call.1} parent=15 // pred_check_branch
          %506 = sbr.rel (%p504) target = $region56
        $region55: #{tpu_custom_call.1} parent=15 // pred_region
          %s507 = sand.u32 %s30, 1
          %s508 = scalar_lea.sflag [#allocation11], %s507
          %s509 = sand.u32 %s286, 1
          %s510 = scalar_lea.vmem [#allocation12], %s509
          %s512 = ssub.s32 16, 16
          %513 = vsyncadd %s508, %s512
          %s514 = smul.addr %s38, 16
          %s515 = scalar_lea.hbm %s9, %s514
          %s517 = sshll.u32 %s510, 4
          %s518 = int_to_ptr.vmem [resolvable:$true] %s517
          %520 = dma.hbm_to_vmem [thread:$0]  %s515, 16, %s518, %s508
        $region56: #{tpu_custom_call.1} parent=15 // pred_fallthru
          _
        // Predicated region
        $region57: #{tpu_custom_call.1} parent=15 // pred_check
          %p521 = pneg %p322
        $region58: #{tpu_custom_call.1} parent=15 // pred_check_branch
          %523 = sbr.rel (%p521) target = $region60
        $region59: #{tpu_custom_call.1} parent=15 // pred_region
          %p524 = scmp.lt.s32.totalorder %s38, 1
          %s525 = scalar_select %p524, %s38, 1
          %s526 = smul.addr %s525, 8
          %s527 = smul.addr %s526, 4
          %s528 = scalar_lea.vmem %s10, %s527
        $region60: #{tpu_custom_call.1} parent=15 // pred_fallthru
          _
        // Predicated region
        $region61: #{tpu_custom_call.1} parent=15 // pred_check
          %p529 = pneg %p348
        $region62: #{tpu_custom_call.1} parent=15 // pred_check_branch
          %531 = sbr.rel (%p529) target = $region64
        $region63: #{tpu_custom_call.1} parent=15 // pred_region
          %p532 = scmp.lt.s32.totalorder %s38, 1
          %s533 = scalar_select %p532, %s38, 1
          %s534 = scalar_lea.vmem %s11, %s533
        $region64: #{tpu_custom_call.1} parent=15 // pred_fallthru
          _
      $region16: #{tpu_custom_call.1} parent=5 // pred_fallthru
        _
      %p535 = scmp.le.s32.totalorder 1, %s30
      %p536 = scmp.lt.s32.totalorder %s30, 5
      %p537 = pnand %p535, %p536
      %p538 = pneg %p537
      // Predicated region
      $region65: #{tpu_custom_call.1} parent=5 // pred_check
        _
      $region66: #{tpu_custom_call.1} parent=5 // pred_check_branch
        %540 = sbr.rel (%p537) target = $region68
      $region67: #{tpu_custom_call.1} parent=5 // pred_region
        %s541 = ssub.s32 %s30, 1
        %s542 = sand.u32 %s55, 1
        %s543 = scalar_lea.sflag [#allocation5], %s542
        %s544 = sand.u32 %s55, 1
        %s545 = smul.addr %s544, 8
        %s546 = scalar_lea.vmem [#allocation4], %s545
        // Predicated region
        $region69: #{tpu_custom_call.1} parent=67 // pred_check
          %p547 = pneg %p68
        $region70: #{tpu_custom_call.1} parent=67 // pred_check_branch
          %549 = sbr.rel (%p547) target = $region72
        $region71: #{tpu_custom_call.1} parent=67 // pred_region
          %550 = dma.done %s543, 128
        $region72: #{tpu_custom_call.1} parent=67 // pred_fallthru
          _
        %s551 = sand.u32 %s35, 1
        %s552 = scalar_lea.sflag [#allocation8], %s551
        %s553 = sand.u32 %s185, 1
        %s554 = scalar_lea.vmem [#allocation7], %s553
        // Predicated region
        $region73: #{tpu_custom_call.1} parent=67 // pred_check
          %p555 = pneg %p198
        $region74: #{tpu_custom_call.1} parent=67 // pred_check_branch
          %557 = sbr.rel (%p555) target = $region76
        $region75: #{tpu_custom_call.1} parent=67 // pred_region
          %558 = dma.done %s552, 16
        $region76: #{tpu_custom_call.1} parent=67 // pred_fallthru
          _
        %s559 = sand.u32 %s35, 1
        %s560 = scalar_lea.sflag [#allocation8], %s559
        %s561 = sand.u32 %s211, 1
        %s562 = scalar_lea.vmem [#allocation9], %s561
        // Predicated region
        $region77: #{tpu_custom_call.1} parent=67 // pred_check
          %p563 = pneg %p224
        $region78: #{tpu_custom_call.1} parent=67 // pred_check_branch
          %565 = sbr.rel (%p563) target = $region80
        $region79: #{tpu_custom_call.1} parent=67 // pred_region
          %566 = dma.done %s560, 16
        $region80: #{tpu_custom_call.1} parent=67 // pred_fallthru
          _
        %s567 = sand.u32 %s35, 1
        %s568 = scalar_lea.sflag [#allocation11], %s567
        %s569 = sand.u32 %s237, 1
        %s570 = scalar_lea.vmem [#allocation10], %s569
        // Predicated region
        $region81: #{tpu_custom_call.1} parent=67 // pred_check
          %p571 = pneg %p250
        $region82: #{tpu_custom_call.1} parent=67 // pred_check_branch
          %573 = sbr.rel (%p571) target = $region84
        $region83: #{tpu_custom_call.1} parent=67 // pred_region
          %574 = dma.done %s568, 16
        $region84: #{tpu_custom_call.1} parent=67 // pred_fallthru
          _
        %s575 = sand.u32 %s35, 1
        %s576 = scalar_lea.sflag [#allocation11], %s575
        %s577 = sand.u32 %s289, 1
        %s578 = scalar_lea.vmem [#allocation12], %s577
        // Predicated region
        $region85: #{tpu_custom_call.1} parent=67 // pred_check
          %p579 = pneg %p302
        $region86: #{tpu_custom_call.1} parent=67 // pred_check_branch
          %581 = sbr.rel (%p579) target = $region88
        $region87: #{tpu_custom_call.1} parent=67 // pred_region
          %582 = dma.done %s576, 16
        $region88: #{tpu_custom_call.1} parent=67 // pred_fallthru
          _
        %s583 = sand.u32 %s55, 1
        %s584 = scalar_lea.sflag [#allocation5], %s583
        %s585 = sand.u32 %s55, 1
        %s586 = smul.addr %s585, 8
        %s587 = scalar_lea.vmem [#allocation4], %s586
        %p588 = pneg %p68
        %p589 = pneg %p65
        %p590 = scmp.lt.s32.totalorder %s40, 1
        %s591 = scalar_select %p590, %s40, 1
        %s592 = scalar_lea.vmem %s1, %s591
        %p593 = pneg %p94
        %p594 = pneg %p91
        %p595 = scmp.lt.s32.totalorder %s40, 1
        %s596 = scalar_select %p595, %s40, 1
        %s597 = scalar_lea.vmem %s2, %s596
        %p598 = pneg %p120
        %p599 = pneg %p117
        %p600 = scmp.lt.s32.totalorder %s40, 1
        %s601 = scalar_select %p600, %s40, 1
        %s602 = smul.addr %s601, 4
        %s603 = smul.addr %s602, 4
        %s604 = scalar_lea.vmem %s3, %s603
        %p605 = pneg %p146
        %p606 = pneg %p143
        %p607 = scmp.lt.s32.totalorder %s40, 1
        %s608 = scalar_select %p607, %s40, 1
        %s609 = smul.addr %s608, 4
        %s610 = smul.addr %s609, 4
        %s611 = scalar_lea.vmem %s4, %s610
        %p612 = pneg %p172
        %p613 = pneg %p169
        %s614 = sand.u32 %s35, 1
        %s615 = scalar_lea.sflag [#allocation8], %s614
        %s616 = sand.u32 %s185, 1
        %s617 = scalar_lea.vmem [#allocation7], %s616
        %p618 = pneg %p198
        %p619 = pneg %p195
        %s620 = sand.u32 %s35, 1
        %s621 = scalar_lea.sflag [#allocation8], %s620
        %s622 = sand.u32 %s211, 1
        %s623 = scalar_lea.vmem [#allocation9], %s622
        %p624 = pneg %p224
        %p625 = pneg %p221
        %s626 = sand.u32 %s35, 1
        %s627 = scalar_lea.sflag [#allocation11], %s626
        %s628 = sand.u32 %s237, 1
        %s629 = scalar_lea.vmem [#allocation10], %s628
        %p630 = pneg %p250
        %p631 = pneg %p247
        %p632 = scmp.lt.s32.totalorder %s40, 1
        %s633 = scalar_select %p632, %s40, 1
        %s634 = smul.addr %s633, 4
        %s635 = smul.addr %s634, 4
        %s636 = scalar_lea.vmem %s8, %s635
        %p637 = pneg %p276
        %p638 = pneg %p273
        %s639 = sand.u32 %s35, 1
        %s640 = scalar_lea.sflag [#allocation11], %s639
        %s641 = sand.u32 %s289, 1
        %s642 = scalar_lea.vmem [#allocation12], %s641
        %p643 = pneg %p302
        %p644 = pneg %p299
        %p645 = scmp.lt.s32.totalorder %s40, 1
        %s646 = scalar_select %p645, %s40, 1
        %s647 = smul.addr %s646, 8
        %s648 = smul.addr %s647, 4
        %s649 = scalar_lea.vmem %s10, %s648
        %p650 = pneg %p328
        %p651 = pneg %p325
        %p652 = scmp.lt.s32.totalorder %s40, 1
        %s653 = scalar_select %p652, %s40, 1
        %s654 = scalar_lea.vmem %s11, %s653
        %p655 = pneg %p354
        %p656 = pneg %p351
        %p657 = pneg %p380
        %p658 = pneg %p377
        %s659 = sand.u32 %s367, 1
        %s660 = scalar_lea.sflag [#allocation6], %s659
        %s661 = sand.u32 %s367, 1
        %s662 = smul.addr %s661, 8
        %s663 = scalar_lea.vmem [#allocation13], %s662
        %p664 = scmp.lt.s32.totalorder %s40, 1
        %s665 = scalar_select %p664, %s40, 1
        %s666 = scalar_lea.vmem %s1, %s665
        %p667 = scmp.lt.s32.totalorder %s40, 1
        %s668 = scalar_select %p667, %s40, 1
        %s669 = scalar_lea.vmem %s2, %s668
        %p670 = scmp.lt.s32.totalorder %s40, 1
        %s671 = scalar_select %p670, %s40, 1
        %s672 = smul.addr %s671, 4
        %s673 = smul.addr %s672, 4
        %s674 = scalar_lea.vmem %s3, %s673
        %p675 = scmp.lt.s32.totalorder %s40, 1
        %s676 = scalar_select %p675, %s40, 1
        %s677 = smul.addr %s676, 4
        %s678 = smul.addr %s677, 4
        %s679 = scalar_lea.vmem %s4, %s678
        %p680 = scmp.lt.s32.totalorder %s40, 1
        %s681 = scalar_select %p680, %s40, 1
        %s682 = smul.addr %s681, 4
        %s683 = smul.addr %s682, 4
        %s684 = scalar_lea.vmem %s8, %s683
        %p685 = scmp.lt.s32.totalorder %s40, 1
        %s686 = scalar_select %p685, %s40, 1
        %s687 = smul.addr %s686, 8
        %s688 = smul.addr %s687, 4
        %s689 = scalar_lea.vmem %s10, %s688
        %p690 = scmp.lt.s32.totalorder %s40, 1
        %s691 = scalar_select %p690, %s40, 1
        %s692 = scalar_lea.vmem %s11, %s691
        %p694 = scmp.eq.s32.totalorder %s40, 0
        // Predicated region
        $region89: #{tpu_custom_call.1} parent=67 // pred_check
          %p695 = pneg %p694
        $region90: #{tpu_custom_call.1} parent=67 // pred_check_branch
          %697 = sbr.rel (%p695) target = $region92
        $region91: #{tpu_custom_call.1} parent=67 // pred_region
          %v698 = vld [vmem:[%s546] sm:$0xff]
          %vm699 = vcmask 261120
          %700 = vst.msk [vmem:[#allocation2] sm:$0xff] %vm699, %v698
        $region92: #{tpu_custom_call.1} parent=67 // pred_fallthru
          _
        %v701 = vld [vmem:[#allocation2] sm:$0xff]
        %vm702 = vcmask 261120
        %v703 = vsel %vm702, %v701, 0.0
        %704 = vadd.xlane.f32.xlu0 %v703
        %v705 = vpop.xlane.xlu0 %704
        %v706 = vrcp.pop 32.0
        %v707 = vmul.f32 %v705, %v706
        %v708 = vsub.f32 %v701, %v707
        %v709 = vmul.f32 %v708, %v708
        %v710 = vsel %vm702, %v709, 0.0
        %711 = vadd.xlane.f32.xlu0 %v710
        %v712 = vpop.xlane.xlu0 %711
        %v713 = vmul.f32 %v712, %v706
        %v714 = vadd.f32 %v713, 1e-05
        %v715 = vrsqrt.pop %v714
        %v716 = vmul.f32 %v708, %v715
        %v717 = vld [vmem:[%s666] sm:$0x1]
        %v719 = vlaneseq
        %v720 = vshrl.u32 %v719, 7
        %v721 = vsub.s32 0, %v720
        %v722 = vrot.slane %v717, %v721
        %v724 = vmul.f32 %v716, %v722
        %v725 = vld [vmem:[%s669] sm:$0x1]
        %v727 = vlaneseq
        %v728 = vshrl.u32 %v727, 7
        %v729 = vsub.s32 0, %v728
        %v730 = vrot.slane %v725, %v729
        %v732 = vadd.f32 %v724, %v730
        %v733 = vpack.c.bf16 %v732, %v732
        %v734 = vld [vmem:[%s674] sm:$0xf]
        %v735 = vld [vmem:[%s674 + $0x4] sm:$0xf]
        %v736 = vld [vmem:[%s674 + $0x8] sm:$0xf]
        %v737 = vld [vmem:[%s674 + $0xc] sm:$0xf]
        %v742 = vunpack.c.l.b16 %v734
        %v743 = vunpack.c.l.b16 %v735
        %v744 = vunpack.c.l.b16 %v736
        %v745 = vunpack.c.l.b16 %v737
        %v746 = vpack.c.b16 %v743, %v742
        %v747 = vpack.c.b16 %v745, %v744
        %v751 = vsel %vm702, %v733, 0
        %753 = vmatprep.subr.bf16.mxu0 0
        %754 = vmatpush1.bf16.msra.mxu0 %v746
        %755 = vmatprep.subr.bf16.mxu0 0
        %756 = vmatpush1.bf16.msra.mxu0 %v747
        %757 = vmatprep.subr.bf16.mxu0 0
        %758 = vmatpush1.bf16.msra.mxu0 0
        %759 = vmatprep.subr.bf16.mxu0 0
        %760 = vmatpush1.bf16.msra.mxu0 0
        %761 = vmatprep.subr.bf16.mxu0 0
        %762 = vmatpush1.bf16.msra.mxu0 0
        %763 = vmatprep.subr.bf16.mxu0 0
        %764 = vmatpush1.bf16.msra.mxu0 0
        %765 = vmatprep.subr.bf16.mxu0 0
        %766 = vmatpush1.bf16.msra.mxu0 0
        %767 = vmatprep.subr.bf16.mxu0 0
        %768 = vmatpush1.bf16.msra.mxu0 0
        %769 = vmatprep.subr.bf16.mxu0 0
        %770 = vmatpush1.bf16.msra.mxu0 0
        %771 = vmatprep.subr.bf16.mxu0 0
        %772 = vmatpush1.bf16.msra.mxu0 0
        %773 = vmatprep.subr.bf16.mxu0 0
        %774 = vmatpush1.bf16.msra.mxu0 0
        %775 = vmatprep.subr.bf16.mxu0 0
        %776 = vmatpush1.bf16.msra.mxu0 0
        %777 = vmatprep.subr.bf16.mxu0 0
        %778 = vmatpush1.bf16.msra.mxu0 0
        %779 = vmatprep.subr.bf16.mxu0 0
        %780 = vmatpush1.bf16.msra.mxu0 0
        %781 = vmatprep.subr.bf16.mxu0 0
        %782 = vmatpush1.bf16.msra.mxu0 0
        %783 = vmatprep.subr.bf16.mxu0 0
        %784 = vmatpush1.bf16.msra.mxu0 0
        %785 = vmatprep.mubr.bf16.mxu0 0
        %786 = vmatmul.mubr.bf16.gmra.mrb[0].mxu0 %v751
        %v787 = vpop.f32.mrb[0].mxu0
        %v788 = vadd.f32 0.0, %v787
        %v789 = vpop.f32.mrb[0].mxu0
        %v790 = vpop.f32.mrb[0].mxu0
        %v791 = vpop.f32.mrb[0].mxu0
        %792 = vdwg.mxu0
        %v793 = vpack.c.bf16 %v788, %v788
        %795 = vrot.lane.b32.xlu0 %v793, 96
        %v796 = vpop.permute.xlu0 %795
        %vm797 = vcmask 64512
        %v799 = vsel %vm797, %v793, 0
        %v802 = vsel %vm797, %v796, 0
        %804 = vmatprep.subr.bf16.mxu0 0
        %805 = vmatpush1.bf16.xpose.msra.mxu0 %v802
        %806 = vmatprep.subr.bf16.mxu0 0
        %807 = vmatpush1.bf16.xpose.msra.mxu0 0
        %808 = vmatprep.subr.bf16.mxu0 0
        %809 = vmatpush1.bf16.xpose.msra.mxu0 0
        %810 = vmatprep.subr.bf16.mxu0 0
        %811 = vmatpush1.bf16.xpose.msra.mxu0 0
        %812 = vmatprep.subr.bf16.mxu0 0
        %813 = vmatpush1.bf16.xpose.msra.mxu0 0
        %814 = vmatprep.subr.bf16.mxu0 0
        %815 = vmatpush1.bf16.xpose.msra.mxu0 0
        %816 = vmatprep.subr.bf16.mxu0 0
        %817 = vmatpush1.bf16.xpose.msra.mxu0 0
        %818 = vmatprep.subr.bf16.mxu0 0
        %819 = vmatpush1.bf16.xpose.msra.mxu0 0
        %820 = vmatprep.subr.bf16.mxu0 0
        %821 = vmatpush1.bf16.xpose.msra.mxu0 0
        %822 = vmatprep.subr.bf16.mxu0 0
        %823 = vmatpush1.bf16.xpose.msra.mxu0 0
        %824 = vmatprep.subr.bf16.mxu0 0
        %825 = vmatpush1.bf16.xpose.msra.mxu0 0
        %826 = vmatprep.subr.bf16.mxu0 0
        %827 = vmatpush1.bf16.xpose.msra.mxu0 0
        %828 = vmatprep.subr.bf16.mxu0 0
        %829 = vmatpush1.bf16.xpose.msra.mxu0 0
        %830 = vmatprep.subr.bf16.mxu0 0
        %831 = vmatpush1.bf16.xpose.msra.mxu0 0
        %832 = vmatprep.subr.bf16.mxu0 0
        %833 = vmatpush1.bf16.xpose.msra.mxu0 0
        %834 = vmatprep.subr.bf16.mxu0 0
        %835 = vmatpush1.bf16.xpose.msra.mxu0 0
        %836 = vmatprep.mubr.bf16.mxu0 0
        %837 = vmatmul.mubr.bf16.gmra.mrb[0].mxu0 %v799
        %v838 = vpop.f32.mrb[0].mxu0
        %v839 = vadd.f32 0.0, %v838
        %v840 = vpop.f32.mrb[0].mxu0
        %v841 = vpop.f32.mrb[0].mxu0
        %v842 = vpop.f32.mrb[0].mxu0
        %843 = vdwg.mxu0
        %v844 = vsel %vm797, %v839, -inf
        %845 = vmax.xlane.f32.xlu0 %v844
        %v846 = vpop.xlane.xlu0 %845
        %v847 = vsub.f32 %v839, %v846
        %v848 = vmul.f32 %v847, 1.442695
        %v849 = vpow.pop %v848
        %v850 = vsel %vm797, %v849, 0.0
        %851 = vadd.xlane.f32.xlu0 %v850
        %v852 = vpop.xlane.xlu0 %851
        %v853 = vrcp.pop %v852
        %v854 = vmul.f32 %v849, %v853
        %v855 = vpack.c.bf16 %v854, %v854
        %856 = vrot.lane.b32.xlu0 %v793, 64
        %v857 = vpop.permute.xlu0 %856
        %v859 = vsel %vm797, %v855, 0
        %vm861 = vcmask 1043456
        %v863 = vsel %vm861, %v857, 0
        %865 = vmatprep.subr.bf16.mxu0 0
        %866 = vmatpush1.bf16.msra.mxu0 %v863
        %867 = vmatprep.subr.bf16.mxu0 0
        %868 = vmatpush1.bf16.msra.mxu0 0
        %869 = vmatprep.subr.bf16.mxu0 0
        %870 = vmatpush1.bf16.msra.mxu0 0
        %871 = vmatprep.subr.bf16.mxu0 0
        %872 = vmatpush1.bf16.msra.mxu0 0
        %873 = vmatprep.subr.bf16.mxu0 0
        %874 = vmatpush1.bf16.msra.mxu0 0
        %875 = vmatprep.subr.bf16.mxu0 0
        %876 = vmatpush1.bf16.msra.mxu0 0
        %877 = vmatprep.subr.bf16.mxu0 0
        %878 = vmatpush1.bf16.msra.mxu0 0
        %879 = vmatprep.subr.bf16.mxu0 0
        %880 = vmatpush1.bf16.msra.mxu0 0
        %881 = vmatprep.subr.bf16.mxu0 0
        %882 = vmatpush1.bf16.msra.mxu0 0
        %883 = vmatprep.subr.bf16.mxu0 0
        %884 = vmatpush1.bf16.msra.mxu0 0
        %885 = vmatprep.subr.bf16.mxu0 0
        %886 = vmatpush1.bf16.msra.mxu0 0
        %887 = vmatprep.subr.bf16.mxu0 0
        %888 = vmatpush1.bf16.msra.mxu0 0
        %889 = vmatprep.subr.bf16.mxu0 0
        %890 = vmatpush1.bf16.msra.mxu0 0
        %891 = vmatprep.subr.bf16.mxu0 0
        %892 = vmatpush1.bf16.msra.mxu0 0
        %893 = vmatprep.subr.bf16.mxu0 0
        %894 = vmatpush1.bf16.msra.mxu0 0
        %895 = vmatprep.subr.bf16.mxu0 0
        %896 = vmatpush1.bf16.msra.mxu0 0
        %897 = vmatprep.mubr.bf16.mxu0 0
        %898 = vmatmul.mubr.bf16.gmra.mrb[0].mxu0 %v859
        %v899 = vpop.f32.mrb[0].mxu0
        %v900 = vadd.f32 0.0, %v899
        %v901 = vpop.f32.mrb[0].mxu0
        %v902 = vpop.f32.mrb[0].mxu0
        %v903 = vpop.f32.mrb[0].mxu0
        %904 = vdwg.mxu0
        %905 = vst.msk [vmem:[#allocation3] sm:$0xff] %vm797, %v900
        %906 = vrot.lane.b32.xlu0 %v793, 120
        %v907 = vpop.permute.xlu0 %906
        %908 = vrot.lane.b32.xlu0 %v793, 88
        %v909 = vpop.permute.xlu0 %908
        %v911 = vsel %vm797, %v907, 0
        %v914 = vsel %vm797, %v909, 0
        %916 = vmatprep.subr.bf16.mxu0 0
        %917 = vmatpush1.bf16.xpose.msra.mxu0 %v914
        %918 = vmatprep.subr.bf16.mxu0 0
        %919 = vmatpush1.bf16.xpose.msra.mxu0 0
        %920 = vmatprep.subr.bf16.mxu0 0
        %921 = vmatpush1.bf16.xpose.msra.mxu0 0
        %922 = vmatprep.subr.bf16.mxu0 0
        %923 = vmatpush1.bf16.xpose.msra.mxu0 0
        %924 = vmatprep.subr.bf16.mxu0 0
        %925 = vmatpush1.bf16.xpose.msra.mxu0 0
        %926 = vmatprep.subr.bf16.mxu0 0
        %927 = vmatpush1.bf16.xpose.msra.mxu0 0
        %928 = vmatprep.subr.bf16.mxu0 0
        %929 = vmatpush1.bf16.xpose.msra.mxu0 0
        %930 = vmatprep.subr.bf16.mxu0 0
        %931 = vmatpush1.bf16.xpose.msra.mxu0 0
        %932 = vmatprep.subr.bf16.mxu0 0
        %933 = vmatpush1.bf16.xpose.msra.mxu0 0
        %934 = vmatprep.subr.bf16.mxu0 0
        %935 = vmatpush1.bf16.xpose.msra.mxu0 0
        %936 = vmatprep.subr.bf16.mxu0 0
        %937 = vmatpush1.bf16.xpose.msra.mxu0 0
        %938 = vmatprep.subr.bf16.mxu0 0
        %939 = vmatpush1.bf16.xpose.msra.mxu0 0
        %940 = vmatprep.subr.bf16.mxu0 0
        %941 = vmatpush1.bf16.xpose.msra.mxu0 0
        %942 = vmatprep.subr.bf16.mxu0 0
        %943 = vmatpush1.bf16.xpose.msra.mxu0 0
        %944 = vmatprep.subr.bf16.mxu0 0
        %945 = vmatpush1.bf16.xpose.msra.mxu0 0
        %946 = vmatprep.subr.bf16.mxu0 0
        %947 = vmatpush1.bf16.xpose.msra.mxu0 0
        %948 = vmatprep.mubr.bf16.mxu0 0
        %949 = vmatmul.mubr.bf16.gmra.mrb[0].mxu0 %v911
        %v950 = vpop.f32.mrb[0].mxu0
        %v951 = vadd.f32 0.0, %v950
        %v952 = vpop.f32.mrb[0].mxu0
        %v953 = vpop.f32.mrb[0].mxu0
        %v954 = vpop.f32.mrb[0].mxu0
        %955 = vdwg.mxu0
        %v956 = vsel %vm797, %v951, -inf
        %957 = vmax.xlane.f32.xlu0 %v956
        %v958 = vpop.xlane.xlu0 %957
        %v959 = vsub.f32 %v951, %v958
        %v960 = vmul.f32 %v959, 1.442695
        %v961 = vpow.pop %v960
        %v962 = vsel %vm797, %v961, 0.0
        %963 = vadd.xlane.f32.xlu0 %v962
        %v964 = vpop.xlane.xlu0 %963
        %v965 = vrcp.pop %v964
        %v966 = vmul.f32 %v961, %v965
        %v967 = vpack.c.bf16 %v966, %v966
        %968 = vrot.lane.b32.xlu0 %v793, 56
        %v969 = vpop.permute.xlu0 %968
        %v971 = vsel %vm797, %v967, 0
        %v974 = vsel %vm861, %v969, 0
        %976 = vmatprep.subr.bf16.mxu0 0
        %977 = vmatpush1.bf16.msra.mxu0 %v974
        %978 = vmatprep.subr.bf16.mxu0 0
        %979 = vmatpush1.bf16.msra.mxu0 0
        %980 = vmatprep.subr.bf16.mxu0 0
        %981 = vmatpush1.bf16.msra.mxu0 0
        %982 = vmatprep.subr.bf16.mxu0 0
        %983 = vmatpush1.bf16.msra.mxu0 0
        %984 = vmatprep.subr.bf16.mxu0 0
        %985 = vmatpush1.bf16.msra.mxu0 0
        %986 = vmatprep.subr.bf16.mxu0 0
        %987 = vmatpush1.bf16.msra.mxu0 0
        %988 = vmatprep.subr.bf16.mxu0 0
        %989 = vmatpush1.bf16.msra.mxu0 0
        %990 = vmatprep.subr.bf16.mxu0 0
        %991 = vmatpush1.bf16.msra.mxu0 0
        %992 = vmatprep.subr.bf16.mxu0 0
        %993 = vmatpush1.bf16.msra.mxu0 0
        %994 = vmatprep.subr.bf16.mxu0 0
        %995 = vmatpush1.bf16.msra.mxu0 0
        %996 = vmatprep.subr.bf16.mxu0 0
        %997 = vmatpush1.bf16.msra.mxu0 0
        %998 = vmatprep.subr.bf16.mxu0 0
        %999 = vmatpush1.bf16.msra.mxu0 0
        %1000 = vmatprep.subr.bf16.mxu0 0
        %1001 = vmatpush1.bf16.msra.mxu0 0
        %1002 = vmatprep.subr.bf16.mxu0 0
        %1003 = vmatpush1.bf16.msra.mxu0 0
        %1004 = vmatprep.subr.bf16.mxu0 0
        %1005 = vmatpush1.bf16.msra.mxu0 0
        %1006 = vmatprep.subr.bf16.mxu0 0
        %1007 = vmatpush1.bf16.msra.mxu0 0
        %1008 = vmatprep.mubr.bf16.mxu0 0
        %1009 = vmatmul.mubr.bf16.gmra.mrb[0].mxu0 %v971
        %v1010 = vpop.f32.mrb[0].mxu0
        %v1011 = vadd.f32 0.0, %v1010
        %v1012 = vpop.f32.mrb[0].mxu0
        %v1013 = vpop.f32.mrb[0].mxu0
        %v1014 = vpop.f32.mrb[0].mxu0
        %1015 = vdwg.mxu0
        %1017 = vrot.lane.b32.xlu0 %v1011, 8
        %v1018 = vpop.permute.xlu0 %1017
        %vm1020 = vcmask 130112
        %1021 = vst.msk [vmem:[#allocation3] sm:$0xff] %vm1020, %v1018
        %1022 = vrot.lane.b32.xlu0 %v793, 112
        %v1023 = vpop.permute.xlu0 %1022
        %1024 = vrot.lane.b32.xlu0 %v793, 80
        %v1025 = vpop.permute.xlu0 %1024
        %v1027 = vsel %vm797, %v1023, 0
        %v1030 = vsel %vm797, %v1025, 0
        %1032 = vmatprep.subr.bf16.mxu0 0
        %1033 = vmatpush1.bf16.xpose.msra.mxu0 %v1030
        %1034 = vmatprep.subr.bf16.mxu0 0
        %1035 = vmatpush1.bf16.xpose.msra.mxu0 0
        %1036 = vmatprep.subr.bf16.mxu0 0
        %1037 = vmatpush1.bf16.xpose.msra.mxu0 0
        %1038 = vmatprep.subr.bf16.mxu0 0
        %1039 = vmatpush1.bf16.xpose.msra.mxu0 0
        %1040 = vmatprep.subr.bf16.mxu0 0
        %1041 = vmatpush1.bf16.xpose.msra.mxu0 0
        %1042 = vmatprep.subr.bf16.mxu0 0
        %1043 = vmatpush1.bf16.xpose.msra.mxu0 0
        %1044 = vmatprep.subr.bf16.mxu0 0
        %1045 = vmatpush1.bf16.xpose.msra.mxu0 0
        %1046 = vmatprep.subr.bf16.mxu0 0
        %1047 = vmatpush1.bf16.xpose.msra.mxu0 0
        %1048 = vmatprep.subr.bf16.mxu0 0
        %1049 = vmatpush1.bf16.xpose.msra.mxu0 0
        %1050 = vmatprep.subr.bf16.mxu0 0
        %1051 = vmatpush1.bf16.xpose.msra.mxu0 0
        %1052 = vmatprep.subr.bf16.mxu0 0
        %1053 = vmatpush1.bf16.xpose.msra.mxu0 0
        %1054 = vmatprep.subr.bf16.mxu0 0
        %1055 = vmatpush1.bf16.xpose.msra.mxu0 0
        %1056 = vmatprep.subr.bf16.mxu0 0
        %1057 = vmatpush1.bf16.xpose.msra.mxu0 0
        %1058 = vmatprep.subr.bf16.mxu0 0
        %1059 = vmatpush1.bf16.xpose.msra.mxu0 0
        %1060 = vmatprep.subr.bf16.mxu0 0
        %1061 = vmatpush1.bf16.xpose.msra.mxu0 0
        %1062 = vmatprep.subr.bf16.mxu0 0
        %1063 = vmatpush1.bf16.xpose.msra.mxu0 0
        %1064 = vmatprep.mubr.bf16.mxu0 0
        %1065 = vmatmul.mubr.bf16.gmra.mrb[0].mxu0 %v1027
        %v1066 = vpop.f32.mrb[0].mxu0
        %v1067 = vadd.f32 0.0, %v1066
        %v1068 = vpop.f32.mrb[0].mxu0
        %v1069 = vpop.f32.mrb[0].mxu0
        %v1070 = vpop.f32.mrb[0].mxu0
        %1071 = vdwg.mxu0
        %v1072 = vsel %vm797, %v1067, -inf
        %1073 = vmax.xlane.f32.xlu0 %v1072
        %v1074 = vpop.xlane.xlu0 %1073
        %v1075 = vsub.f32 %v1067, %v1074
        %v1076 = vmul.f32 %v1075, 1.442695
        %v1077 = vpow.pop %v1076
        %v1078 = vsel %vm797, %v1077, 0.0
        %1079 = vadd.xlane.f32.xlu0 %v1078
        %v1080 = vpop.xlane.xlu0 %1079
        %v1081 = vrcp.pop %v1080
        %v1082 = vmul.f32 %v1077, %v1081
        %v1083 = vpack.c.bf16 %v1082, %v1082
        %1084 = vrot.lane.b32.xlu0 %v793, 48
        %v1085 = vpop.permute.xlu0 %1084
        %v1087 = vsel %vm797, %v1083, 0
        %v1090 = vsel %vm861, %v1085, 0
        %1092 = vmatprep.subr.bf16.mxu0 0
        %1093 = vmatpush1.bf16.msra.mxu0 %v1090
        %1094 = vmatprep.subr.bf16.mxu0 0
        %1095 = vmatpush1.bf16.msra.mxu0 0
        %1096 = vmatprep.subr.bf16.mxu0 0
        %1097 = vmatpush1.bf16.msra.mxu0 0
        %1098 = vmatprep.subr.bf16.mxu0 0
        %1099 = vmatpush1.bf16.msra.mxu0 0
        %1100 = vmatprep.subr.bf16.mxu0 0
        %1101 = vmatpush1.bf16.msra.mxu0 0
        %1102 = vmatprep.subr.bf16.mxu0 0
        %1103 = vmatpush1.bf16.msra.mxu0 0
        %1104 = vmatprep.subr.bf16.mxu0 0
        %1105 = vmatpush1.bf16.msra.mxu0 0
        %1106 = vmatprep.subr.bf16.mxu0 0
        %1107 = vmatpush1.bf16.msra.mxu0 0
        %1108 = vmatprep.subr.bf16.mxu0 0
        %1109 = vmatpush1.bf16.msra.mxu0 0
        %1110 = vmatprep.subr.bf16.mxu0 0
        %1111 = vmatpush1.bf16.msra.mxu0 0
        %1112 = vmatprep.subr.bf16.mxu0 0
        %1113 = vmatpush1.bf16.msra.mxu0 0
        %1114 = vmatprep.subr.bf16.mxu0 0
        %1115 = vmatpush1.bf16.msra.mxu0 0
        %1116 = vmatprep.subr.bf16.mxu0 0
        %1117 = vmatpush1.bf16.msra.mxu0 0
        %1118 = vmatprep.subr.bf16.mxu0 0
        %1119 = vmatpush1.bf16.msra.mxu0 0
        %1120 = vmatprep.subr.bf16.mxu0 0
        %1121 = vmatpush1.bf16.msra.mxu0 0
        %1122 = vmatprep.subr.bf16.mxu0 0
        %1123 = vmatpush1.bf16.msra.mxu0 0
        %1124 = vmatprep.mubr.bf16.mxu0 0
        %1125 = vmatmul.mubr.bf16.gmra.mrb[0].mxu0 %v1087
        %v1126 = vpop.f32.mrb[0].mxu0
        %v1127 = vadd.f32 0.0, %v1126
        %v1128 = vpop.f32.mrb[0].mxu0
        %v1129 = vpop.f32.mrb[0].mxu0
        %v1130 = vpop.f32.mrb[0].mxu0
        %1131 = vdwg.mxu0
        %1133 = vrot.lane.b32.xlu0 %v1127, 16
        %v1134 = vpop.permute.xlu0 %1133
        %vm1136 = vcmask 195712
        %1137 = vst.msk [vmem:[#allocation3] sm:$0xff] %vm1136, %v1134
        %1138 = vrot.lane.b32.xlu0 %v793, 104
        %v1139 = vpop.permute.xlu0 %1138
        %1140 = vrot.lane.b32.xlu0 %v793, 72
        %v1141 = vpop.permute.xlu0 %1140
        %v1143 = vsel %vm797, %v1139, 0
        %v1146 = vsel %vm797, %v1141, 0
        %1148 = vmatprep.subr.bf16.mxu0 0
        %1149 = vmatpush1.bf16.xpose.msra.mxu0 %v1146
        %1150 = vmatprep.subr.bf16.mxu0 0
        %1151 = vmatpush1.bf16.xpose.msra.mxu0 0
        %1152 = vmatprep.subr.bf16.mxu0 0
        %1153 = vmatpush1.bf16.xpose.msra.mxu0 0
        %1154 = vmatprep.subr.bf16.mxu0 0
        %1155 = vmatpush1.bf16.xpose.msra.mxu0 0
        %1156 = vmatprep.subr.bf16.mxu0 0
        %1157 = vmatpush1.bf16.xpose.msra.mxu0 0
        %1158 = vmatprep.subr.bf16.mxu0 0
        %1159 = vmatpush1.bf16.xpose.msra.mxu0 0
        %1160 = vmatprep.subr.bf16.mxu0 0
        %1161 = vmatpush1.bf16.xpose.msra.mxu0 0
        %1162 = vmatprep.subr.bf16.mxu0 0
        %1163 = vmatpush1.bf16.xpose.msra.mxu0 0
        %1164 = vmatprep.subr.bf16.mxu0 0
        %1165 = vmatpush1.bf16.xpose.msra.mxu0 0
        %1166 = vmatprep.subr.bf16.mxu0 0
        %1167 = vmatpush1.bf16.xpose.msra.mxu0 0
        %1168 = vmatprep.subr.bf16.mxu0 0
        %1169 = vmatpush1.bf16.xpose.msra.mxu0 0
        %1170 = vmatprep.subr.bf16.mxu0 0
        %1171 = vmatpush1.bf16.xpose.msra.mxu0 0
        %1172 = vmatprep.subr.bf16.mxu0 0
        %1173 = vmatpush1.bf16.xpose.msra.mxu0 0
        %1174 = vmatprep.subr.bf16.mxu0 0
        %1175 = vmatpush1.bf16.xpose.msra.mxu0 0
        %1176 = vmatprep.subr.bf16.mxu0 0
        %1177 = vmatpush1.bf16.xpose.msra.mxu0 0
        %1178 = vmatprep.subr.bf16.mxu0 0
        %1179 = vmatpush1.bf16.xpose.msra.mxu0 0
        %1180 = vmatprep.mubr.bf16.mxu0 0
        %1181 = vmatmul.mubr.bf16.gmra.mrb[0].mxu0 %v1143
        %v1182 = vpop.f32.mrb[0].mxu0
        %v1183 = vadd.f32 0.0, %v1182
        %v1184 = vpop.f32.mrb[0].mxu0
        %v1185 = vpop.f32.mrb[0].mxu0
        %v1186 = vpop.f32.mrb[0].mxu0
        %1187 = vdwg.mxu0
        %v1188 = vsel %vm797, %v1183, -inf
        %1189 = vmax.xlane.f32.xlu0 %v1188
        %v1190 = vpop.xlane.xlu0 %1189
        %v1191 = vsub.f32 %v1183, %v1190
        %v1192 = vmul.f32 %v1191, 1.442695
        %v1193 = vpow.pop %v1192
        %v1194 = vsel %vm797, %v1193, 0.0
        %1195 = vadd.xlane.f32.xlu0 %v1194
        %v1196 = vpop.xlane.xlu0 %1195
        %v1197 = vrcp.pop %v1196
        %v1198 = vmul.f32 %v1193, %v1197
        %v1199 = vpack.c.bf16 %v1198, %v1198
        %1200 = vrot.lane.b32.xlu0 %v793, 40
        %v1201 = vpop.permute.xlu0 %1200
        %v1203 = vsel %vm797, %v1199, 0
        %v1206 = vsel %vm861, %v1201, 0
        %1208 = vmatprep.subr.bf16.mxu0 0
        %1209 = vmatpush1.bf16.msra.mxu0 %v1206
        %1210 = vmatprep.subr.bf16.mxu0 0
        %1211 = vmatpush1.bf16.msra.mxu0 0
        %1212 = vmatprep.subr.bf16.mxu0 0
        %1213 = vmatpush1.bf16.msra.mxu0 0
        %1214 = vmatprep.subr.bf16.mxu0 0
        %1215 = vmatpush1.bf16.msra.mxu0 0
        %1216 = vmatprep.subr.bf16.mxu0 0
        %1217 = vmatpush1.bf16.msra.mxu0 0
        %1218 = vmatprep.subr.bf16.mxu0 0
        %1219 = vmatpush1.bf16.msra.mxu0 0
        %1220 = vmatprep.subr.bf16.mxu0 0
        %1221 = vmatpush1.bf16.msra.mxu0 0
        %1222 = vmatprep.subr.bf16.mxu0 0
        %1223 = vmatpush1.bf16.msra.mxu0 0
        %1224 = vmatprep.subr.bf16.mxu0 0
        %1225 = vmatpush1.bf16.msra.mxu0 0
        %1226 = vmatprep.subr.bf16.mxu0 0
        %1227 = vmatpush1.bf16.msra.mxu0 0
        %1228 = vmatprep.subr.bf16.mxu0 0
        %1229 = vmatpush1.bf16.msra.mxu0 0
        %1230 = vmatprep.subr.bf16.mxu0 0
        %1231 = vmatpush1.bf16.msra.mxu0 0
        %1232 = vmatprep.subr.bf16.mxu0 0
        %1233 = vmatpush1.bf16.msra.mxu0 0
        %1234 = vmatprep.subr.bf16.mxu0 0
        %1235 = vmatpush1.bf16.msra.mxu0 0
        %1236 = vmatprep.subr.bf16.mxu0 0
        %1237 = vmatpush1.bf16.msra.mxu0 0
        %1238 = vmatprep.subr.bf16.mxu0 0
        %1239 = vmatpush1.bf16.msra.mxu0 0
        %1240 = vmatprep.mubr.bf16.mxu0 0
        %1241 = vmatmul.mubr.bf16.gmra.mrb[0].mxu0 %v1203
        %v1242 = vpop.f32.mrb[0].mxu0
        %v1243 = vadd.f32 0.0, %v1242
        %v1244 = vpop.f32.mrb[0].mxu0
        %v1245 = vpop.f32.mrb[0].mxu0
        %v1246 = vpop.f32.mrb[0].mxu0
        %1247 = vdwg.mxu0
        %1249 = vrot.lane.b32.xlu0 %v1243, 24
        %v1250 = vpop.permute.xlu0 %1249
        %vm1252 = vcmask 261312
        %1253 = vst.msk [vmem:[#allocation3] sm:$0xff] %vm1252, %v1250
        %v1254 = vld [vmem:[#allocation3] sm:$0xff]
        %v1255 = vpack.c.bf16 %v1254, %v1254
        %v1256 = vld [vmem:[%s679] sm:$0xf]
        %v1257 = vld [vmem:[%s679 + $0x4] sm:$0xf]
        %v1258 = vld [vmem:[%s679 + $0x8] sm:$0xf]
        %v1259 = vld [vmem:[%s679 + $0xc] sm:$0xf]
        %v1260 = vld [vmem:[%s554] sm:$0x1]
        %v1262 = vlaneseq
        %v1263 = vshrl.u32 %v1262, 7
        %v1264 = vsub.s32 0, %v1263
        %v1265 = vrot.slane %v1260, %v1264
        %v1271 = vunpack.c.l.b16 %v1256
        %v1272 = vunpack.c.l.b16 %v1257
        %v1273 = vunpack.c.l.b16 %v1258
        %v1274 = vunpack.c.l.b16 %v1259
        %v1275 = vpack.c.b16 %v1272, %v1271
        %v1276 = vpack.c.b16 %v1274, %v1273
        %v1280 = vsel %vm702, %v1255, 0
        %1282 = vmatprep.subr.bf16.mxu0 0
        %1283 = vmatpush1.bf16.msra.mxu0 %v1275
        %1284 = vmatprep.subr.bf16.mxu0 0
        %1285 = vmatpush1.bf16.msra.mxu0 %v1276
        %1286 = vmatprep.subr.bf16.mxu0 0
        %1287 = vmatpush1.bf16.msra.mxu0 0
        %1288 = vmatprep.subr.bf16.mxu0 0
        %1289 = vmatpush1.bf16.msra.mxu0 0
        %1290 = vmatprep.subr.bf16.mxu0 0
        %1291 = vmatpush1.bf16.msra.mxu0 0
        %1292 = vmatprep.subr.bf16.mxu0 0
        %1293 = vmatpush1.bf16.msra.mxu0 0
        %1294 = vmatprep.subr.bf16.mxu0 0
        %1295 = vmatpush1.bf16.msra.mxu0 0
        %1296 = vmatprep.subr.bf16.mxu0 0
        %1297 = vmatpush1.bf16.msra.mxu0 0
        %1298 = vmatprep.subr.bf16.mxu0 0
        %1299 = vmatpush1.bf16.msra.mxu0 0
        %1300 = vmatprep.subr.bf16.mxu0 0
        %1301 = vmatpush1.bf16.msra.mxu0 0
        %1302 = vmatprep.subr.bf16.mxu0 0
        %1303 = vmatpush1.bf16.msra.mxu0 0
        %1304 = vmatprep.subr.bf16.mxu0 0
        %1305 = vmatpush1.bf16.msra.mxu0 0
        %1306 = vmatprep.subr.bf16.mxu0 0
        %1307 = vmatpush1.bf16.msra.mxu0 0
        %1308 = vmatprep.subr.bf16.mxu0 0
        %1309 = vmatpush1.bf16.msra.mxu0 0
        %1310 = vmatprep.subr.bf16.mxu0 0
        %1311 = vmatpush1.bf16.msra.mxu0 0
        %1312 = vmatprep.subr.bf16.mxu0 0
        %1313 = vmatpush1.bf16.msra.mxu0 0
        %1314 = vmatprep.mubr.bf16.mxu0 0
        %1315 = vmatmul.mubr.bf16.gmra.mrb[0].mxu0 %v1280
        %v1316 = vpop.f32.mrb[0].mxu0
        %v1317 = vadd.f32 %v1265, %v1316
        %v1318 = vpop.f32.mrb[0].mxu0
        %v1319 = vpop.f32.mrb[0].mxu0
        %v1320 = vpop.f32.mrb[0].mxu0
        %1321 = vdwg.mxu0
        %v1322 = vadd.f32 %v701, %v1317
        %v1323 = vsel %vm702, %v1322, 0.0
        %1324 = vadd.xlane.f32.xlu0 %v1323
        %v1325 = vpop.xlane.xlu0 %1324
        %v1326 = vmul.f32 %v1325, %v706
        %v1327 = vsub.f32 %v1322, %v1326
        %v1328 = vmul.f32 %v1327, %v1327
        %v1329 = vsel %vm702, %v1328, 0.0
        %1330 = vadd.xlane.f32.xlu0 %v1329
        %v1331 = vpop.xlane.xlu0 %1330
        %v1332 = vmul.f32 %v1331, %v706
        %v1333 = vadd.f32 %v1332, 1e-05
        %v1334 = vrsqrt.pop %v1333
        %v1335 = vmul.f32 %v1327, %v1334
        %v1336 = vld [vmem:[%s562] sm:$0x1]
        %v1338 = vlaneseq
        %v1339 = vshrl.u32 %v1338, 7
        %v1340 = vsub.s32 0, %v1339
        %v1341 = vrot.slane %v1336, %v1340
        %v1343 = vmul.f32 %v1335, %v1341
        %v1344 = vld [vmem:[%s570] sm:$0x1]
        %v1346 = vlaneseq
        %v1347 = vshrl.u32 %v1346, 7
        %v1348 = vsub.s32 0, %v1347
        %v1349 = vrot.slane %v1344, %v1348
        %v1351 = vadd.f32 %v1343, %v1349
        %v1352 = vpack.c.bf16 %v1351, %v1351
        %v1353 = vld [vmem:[%s684] sm:$0xf]
        %v1354 = vld [vmem:[%s684 + $0x4] sm:$0xf]
        %v1355 = vld [vmem:[%s684 + $0x8] sm:$0xf]
        %v1356 = vld [vmem:[%s684 + $0xc] sm:$0xf]
        %v1357 = vld [vmem:[%s578] sm:$0x1]
        %v1359 = vlaneseq
        %v1360 = vshrl.u32 %v1359, 7
        %v1361 = vsub.s32 0, %v1360
        %v1362 = vrot.slane %v1357, %v1361
        %v1368 = vunpack.c.l.b16 %v1353
        %v1369 = vunpack.c.l.b16 %v1354
        %v1370 = vunpack.c.l.b16 %v1355
        %v1371 = vunpack.c.l.b16 %v1356
        %v1372 = vpack.c.b16 %v1369, %v1368
        %v1373 = vpack.c.b16 %v1371, %v1370
        %v1377 = vsel %vm702, %v1352, 0
        %1379 = vmatprep.subr.bf16.mxu0 0
        %1380 = vmatpush1.bf16.msra.mxu0 %v1372
        %1381 = vmatprep.subr.bf16.mxu0 0
        %1382 = vmatpush1.bf16.msra.mxu0 %v1373
        %1383 = vmatprep.subr.bf16.mxu0 0
        %1384 = vmatpush1.bf16.msra.mxu0 0
        %1385 = vmatprep.subr.bf16.mxu0 0
        %1386 = vmatpush1.bf16.msra.mxu0 0
        %1387 = vmatprep.subr.bf16.mxu0 0
        %1388 = vmatpush1.bf16.msra.mxu0 0
        %1389 = vmatprep.subr.bf16.mxu0 0
        %1390 = vmatpush1.bf16.msra.mxu0 0
        %1391 = vmatprep.subr.bf16.mxu0 0
        %1392 = vmatpush1.bf16.msra.mxu0 0
        %1393 = vmatprep.subr.bf16.mxu0 0
        %1394 = vmatpush1.bf16.msra.mxu0 0
        %1395 = vmatprep.subr.bf16.mxu0 0
        %1396 = vmatpush1.bf16.msra.mxu0 0
        %1397 = vmatprep.subr.bf16.mxu0 0
        %1398 = vmatpush1.bf16.msra.mxu0 0
        %1399 = vmatprep.subr.bf16.mxu0 0
        %1400 = vmatpush1.bf16.msra.mxu0 0
        %1401 = vmatprep.subr.bf16.mxu0 0
        %1402 = vmatpush1.bf16.msra.mxu0 0
        %1403 = vmatprep.subr.bf16.mxu0 0
        %1404 = vmatpush1.bf16.msra.mxu0 0
        %1405 = vmatprep.subr.bf16.mxu0 0
        %1406 = vmatpush1.bf16.msra.mxu0 0
        %1407 = vmatprep.subr.bf16.mxu0 0
        %1408 = vmatpush1.bf16.msra.mxu0 0
        %1409 = vmatprep.subr.bf16.mxu0 0
        %1410 = vmatpush1.bf16.msra.mxu0 0
        %1411 = vmatprep.mubr.bf16.mxu0 0
        %1412 = vmatmul.mubr.bf16.gmra.mrb[0].mxu0 %v1377
        %v1413 = vpop.f32.mrb[0].mxu0
        %v1414 = vadd.f32 %v1362, %v1413
        %v1415 = vpop.f32.mrb[0].mxu0
        %v1416 = vpop.f32.mrb[0].mxu0
        %v1417 = vpop.f32.mrb[0].mxu0
        %1418 = vdwg.mxu0
        %v1419 = vmul.f32 %v1414, 0.5
        %v1420 = vmul.f32 %v1414, 0.70710677
        %v1421 = verf.f32.pop %v1420
        %v1422 = vadd.f32 %v1421, 1.0
        %v1423 = vmul.f32 %v1419, %v1422
        %v1424 = vpack.c.bf16 %v1423, %v1423
        %v1425 = vld [vmem:[%s689] sm:$0xf]
        %v1426 = vld [vmem:[%s689 + $0x4] sm:$0xf]
        %v1427 = vld [vmem:[%s689 + $0x8] sm:$0xf]
        %v1428 = vld [vmem:[%s689 + $0xc] sm:$0xf]
        %v1429 = vld [vmem:[%s689 + $0x10] sm:$0xf]
        %v1430 = vld [vmem:[%s689 + $0x14] sm:$0xf]
        %v1431 = vld [vmem:[%s689 + $0x18] sm:$0xf]
        %v1432 = vld [vmem:[%s689 + $0x1c] sm:$0xf]
        %v1433 = vld [vmem:[%s692] sm:$0x1]
        %v1435 = vlaneseq
        %v1436 = vshrl.u32 %v1435, 7
        %v1437 = vsub.s32 0, %v1436
        %v1438 = vrot.slane %v1433, %v1437
        %v1448 = vunpack.c.l.b16 %v1425
        %v1449 = vunpack.c.l.b16 %v1426
        %v1450 = vunpack.c.l.b16 %v1427
        %v1451 = vunpack.c.l.b16 %v1428
        %v1452 = vunpack.c.l.b16 %v1429
        %v1453 = vunpack.c.l.b16 %v1430
        %v1454 = vunpack.c.l.b16 %v1431
        %v1455 = vunpack.c.l.b16 %v1432
        %v1456 = vpack.c.b16 %v1449, %v1448
        %v1457 = vpack.c.b16 %v1451, %v1450
        %v1458 = vpack.c.b16 %v1453, %v1452
        %v1459 = vpack.c.b16 %v1455, %v1454
        %vm1464 = vcmask 523264
        %v1466 = vsel %vm1464, %v1424, 0
        %1468 = vmatprep.subr.bf16.mxu0 0
        %1469 = vmatpush1.bf16.msra.mxu0 %v1456
        %1470 = vmatprep.subr.bf16.mxu0 0
        %1471 = vmatpush1.bf16.msra.mxu0 %v1457
        %1472 = vmatprep.subr.bf16.mxu0 0
        %1473 = vmatpush1.bf16.msra.mxu0 %v1458
        %1474 = vmatprep.subr.bf16.mxu0 0
        %1475 = vmatpush1.bf16.msra.mxu0 %v1459
        %1476 = vmatprep.subr.bf16.mxu0 0
        %1477 = vmatpush1.bf16.msra.mxu0 0
        %1478 = vmatprep.subr.bf16.mxu0 0
        %1479 = vmatpush1.bf16.msra.mxu0 0
        %1480 = vmatprep.subr.bf16.mxu0 0
        %1481 = vmatpush1.bf16.msra.mxu0 0
        %1482 = vmatprep.subr.bf16.mxu0 0
        %1483 = vmatpush1.bf16.msra.mxu0 0
        %1484 = vmatprep.subr.bf16.mxu0 0
        %1485 = vmatpush1.bf16.msra.mxu0 0
        %1486 = vmatprep.subr.bf16.mxu0 0
        %1487 = vmatpush1.bf16.msra.mxu0 0
        %1488 = vmatprep.subr.bf16.mxu0 0
        %1489 = vmatpush1.bf16.msra.mxu0 0
        %1490 = vmatprep.subr.bf16.mxu0 0
        %1491 = vmatpush1.bf16.msra.mxu0 0
        %1492 = vmatprep.subr.bf16.mxu0 0
        %1493 = vmatpush1.bf16.msra.mxu0 0
        %1494 = vmatprep.subr.bf16.mxu0 0
        %1495 = vmatpush1.bf16.msra.mxu0 0
        %1496 = vmatprep.subr.bf16.mxu0 0
        %1497 = vmatpush1.bf16.msra.mxu0 0
        %1498 = vmatprep.subr.bf16.mxu0 0
        %1499 = vmatpush1.bf16.msra.mxu0 0
        %1500 = vmatprep.mubr.bf16.mxu0 0
        %1501 = vmatmul.mubr.bf16.gmra.mrb[0].mxu0 %v1466
        %v1502 = vpop.f32.mrb[0].mxu0
        %v1503 = vadd.f32 %v1438, %v1502
        %v1504 = vpop.f32.mrb[0].mxu0
        %v1505 = vpop.f32.mrb[0].mxu0
        %v1506 = vpop.f32.mrb[0].mxu0
        %1507 = vdwg.mxu0
        %v1508 = vadd.f32 %v1322, %v1503
        %1509 = vst.msk [vmem:[#allocation2] sm:$0xff] %vm702, %v1508
        %p1510 = scmp.eq.s32.totalorder %s40, 1
        // Predicated region
        $region93: #{tpu_custom_call.1} parent=67 // pred_check
          %p1511 = pneg %p1510
        $region94: #{tpu_custom_call.1} parent=67 // pred_check_branch
          %1513 = sbr.rel (%p1511) target = $region96
        $region95: #{tpu_custom_call.1} parent=67 // pred_region
          %1514 = vst.msk [vmem:[%s663] sm:$0xff] %vm702, %v1508
        $region96: #{tpu_custom_call.1} parent=67 // pred_fallthru
          _
        %s1515 = sand.u32 %s367, 1
        %s1516 = scalar_lea.sflag [#allocation6], %s1515
        %s1517 = sand.u32 %s367, 1
        %s1518 = smul.addr %s1517, 8
        %s1519 = scalar_lea.vmem [#allocation13], %s1518
        // Predicated region
        $region97: #{tpu_custom_call.1} parent=67 // pred_check
          %p1520 = pneg %p377
        $region98: #{tpu_custom_call.1} parent=67 // pred_check_branch
          %1522 = sbr.rel (%p1520) target = $region100
        $region99: #{tpu_custom_call.1} parent=67 // pred_region
          %s1524 = ssub.s32 128, 128
          %1525 = vsyncadd %s1516, %s1524
          %s1526 = smul.addr %s39, 128
          %s1527 = scalar_lea.hbm %s12, %s1526
          %s1529 = sshll.u32 %s1519, 4
          %s1530 = int_to_ptr.vmem [resolvable:$true] %s1529
          %1532 = dma.vmem_to_hbm [thread:$0]  %s1530, 128, %s1527, %s1516
        $region100: #{tpu_custom_call.1} parent=67 // pred_fallthru
          _
      $region68: #{tpu_custom_call.1} parent=5 // pred_fallthru
        _
      %p1533 = scmp.le.s32.totalorder 2, %s30
      // Predicated region
      $region101: #{tpu_custom_call.1} parent=5 // pred_check
        %p1534 = pneg %p1533
      $region102: #{tpu_custom_call.1} parent=5 // pred_check_branch
        %1536 = sbr.rel (%p1534) target = $region104
      $region103: #{tpu_custom_call.1} parent=5 // pred_region
        %s1537 = ssub.s32 %s30, 2
        // Predicated region
        $region105: #{tpu_custom_call.1} parent=103 // pred_check
          %p1538 = pneg %p383
        $region106: #{tpu_custom_call.1} parent=103 // pred_check_branch
          %1540 = sbr.rel (%p1538) target = $region108
        $region107: #{tpu_custom_call.1} parent=103 // pred_region
          %s1541 = sand.u32 %s368, 1
          %s1542 = scalar_lea.sflag [#allocation6], %s1541
          %s1543 = sand.u32 %s368, 1
          %s1544 = smul.addr %s1543, 8
          %s1545 = scalar_lea.vmem [#allocation13], %s1544
          %1546 = dma.done %s1542, 128
        $region108: #{tpu_custom_call.1} parent=103 // pred_fallthru
          _
      $region104: #{tpu_custom_call.1} parent=5 // pred_fallthru
        _
    $region6: #{tpu_custom_call.1} parent=1 // loop_footer
      %s34 = sadd.s32 1, %s30
    $region7: #{tpu_custom_call.1} parent=1 // loop_footer_branch
      %29 = sbr.rel target = $region3
    $region8: #{tpu_custom_call.1} parent=1 // loop_exit
      _
    %1547 = vsyncpa [#allocation5], 1
    %s1548 = scalar_lea.sflag [#allocation5], 1
    %1549 = vsyncpa %s1548, 1
    %1550 = vsyncpa [#allocation8], 1
    %s1551 = scalar_lea.sflag [#allocation8], 1
    %1552 = vsyncpa %s1551, 1
    %1553 = vsyncpa [#allocation11], 1
    %s1554 = scalar_lea.sflag [#allocation11], 1
    %1555 = vsyncpa %s1554, 1
    %1556 = vsyncpa [#allocation6], 1
    %s1557 = scalar_lea.sflag [#allocation6], 1
    %1558 = vsyncpa %s1557, 1

</llo_original>
